<compile_context>
chip_gen: v7x
topology: tpu7x:2x2x1
jax: 0.10.0
libtpu: 0.0.40
codegen_flags: <defaults>
</compile_context>

<pallas_src>
import collections

import numpy as np
import jax
import jax.numpy as jnp
from jax.experimental import pallas as pl
from jax.experimental.pallas import tpu as pltpu

_LANE = 128


# ----------------------------------------------------------------------------- tree schedules
def _build_schedules(parent):
    """Static tree schedules from a parent vector (parent[i] = -1 for roots)."""
    L = len(parent)
    children = [[] for _ in range(L)]
    roots = []
    for i, p in enumerate(parent):
        if p < 0:
            roots.append(i)
        else:
            children[p].append(i)
    depth = [-1] * L
    dq = collections.deque(roots)
    for r in roots:
        depth[r] = 0
    seen = 0
    while dq:
        i = dq.popleft()
        seen += 1
        for c in children[i]:
            depth[c] = depth[i] + 1
            dq.append(c)
    assert seen == L, "parent vector must encode a forest (one parent per node, no cycles)"
    n_lvl = (max(depth) + 1) if L else 0
    levels = [[] for _ in range(n_lvl)]
    for i, d in enumerate(depth):
        levels[d].append(i)

    # upward: family groups, deepest children level first (parent alpha done in one group)
    up_schedule = []
    for level in reversed(levels[1:]):
        groups = {}
        for j in level:
            groups.setdefault(parent[j], []).append(j)
        up_schedule.append(list(groups.items()))

    # downward: family groups in parent level order (parents always before their children)
    dn_schedule = []
    for level in levels:
        for p in level:
            if children[p]:
                dn_schedule.append((p, children[p]))
    dn_order = [c for _, kids in dn_schedule for c in kids]        # all non-root nodes
    dn_pos = {c: i for i, c in enumerate(dn_order)}
    return levels, children, up_schedule, dn_schedule, dn_order, dn_pos


# ----------------------------------------------------------------------------- kernel factory
def _make_treecrf_kernel(levels, children, up_schedule, dn_schedule, dn_pos, n_classes):
    """Pallas kernel specialized on the static tree structure (fully unrolled)."""
    C = n_classes
    roots = levels[0] if levels else []
    has_kids = [bool(k) for k in children]
    TINY = float(np.finfo(np.float32).tiny)        # floor before log; avoids -inf on underflow

    def _lse0(t):  # logsumexp over the class (sublane) axis; sum(exp(.)) >= 1, no floor needed
        m = jnp.max(t, axis=0, keepdims=True)
        return m + jnp.log(jnp.sum(jnp.exp(t - m), axis=0, keepdims=True))

    def kernel(x_ref, eu_ref, ru_ref, ed_ref, rd_ref, out_ref):
        # ---- upward pass (leaves -> roots).  out_ref[j] temporarily stages
        #      S[j] = X[j] + alpha[j], so no alpha stays live in registers across levels.
        for family_groups in up_schedule:
            for p, kids in family_groups:
                acc = None
                for j in kids:
                    local = out_ref[j] if has_kids[j] else x_ref[j]       # = X[j] + alpha[j]
                    m = jnp.max(local, axis=0, keepdims=True)             # (1, Bt)   XLU
                    p_exp = jnp.exp(local - m)                            # (C, Bt)   EUP
                    s = jnp.dot(eu_ref[j], p_exp,
                                preferred_element_type=jnp.float32)       # (C, Bt)   MXU
                    msg = ru_ref[j] + m + jnp.log(jnp.maximum(s, TINY))
                    acc = msg if acc is None else acc + msg
                out_ref[p] = x_ref[p] + acc                               # stage S[p]

        # ---- roots: finalize marginals (beta = 0)
        for r in roots:
            sc = out_ref[r] if has_kids[r] else x_ref[r]
            out_ref[r] = sc - _lse0(sc)

        # ---- downward pass (roots -> leaves), one matmul + one log per family,
        #      marginal finalized immediately (keeps the live set to the tree frontier).
        betas = {}
        for p, kids in dn_schedule:
            local = x_ref[p]
            if p in betas:
                local = local + betas[p]
            m = jnp.max(local, axis=0, keepdims=True)                     # hoisted per family
            p_exp = jnp.exp(local - m)                                    # hoisted per family
            k = len(kids)
            base = dn_pos[kids[0]] * C                                    # siblings are contiguous
            E = ed_ref[base:base + k * C, :]                              # (k*C, C) stacked trans
            s = jnp.dot(E, p_exp, preferred_element_type=jnp.float32)     # one MXU call / family
            msg = rd_ref[base:base + k * C, :] + m + jnp.log(jnp.maximum(s, TINY))
            for idx, c in enumerate(kids):
                beta_c = msg[idx * C:(idx + 1) * C, :]                    # (C, Bt)
                if has_kids[c]:
                    betas[c] = beta_c                                     # needed by c's own family
                sc = (out_ref[c] if has_kids[c] else x_ref[c]) + beta_c   # X + alpha + beta
                out_ref[c] = sc - _lse0(sc)                               # logP, lane-dense store
            betas.pop(p, None)

    return kernel


# ----------------------------------------------------------------------------- wrappers
def treecrf_forward_lcb(x_lcb, pairs, parent_np):
    """Core forward in the TPU-friendly layout.  x_lcb: (L, C, B); returns logP (L, C, B)."""
    L, C, B = x_lcb.shape
    parent_arr = np.asarray(parent_np, dtype=np.int64).reshape(-1)
    parent = [int(p) for p in parent_arr]
    levels, children, up_schedule, dn_schedule, dn_order, dn_pos = _build_schedules(parent)

    # ---- on-device edge prep (traceable, no host sync): gather only the used edges and
    #      hoist exp(trans - rowmax); the kernel never sees the full (L, L, C, C) tensor.
    pairs_f = pairs.astype(jnp.float32)
    lab = np.arange(L)
    pclip = np.maximum(parent_arr, 0)
    up_t = pairs_f[pclip, lab]                                    # (L, C, C): pairs[parent(j), j]
    r_up = jnp.max(up_t, axis=-1, keepdims=True)                  # (L, C, 1)
    e_up = jnp.exp(up_t - r_up)                                   # (L, C, C)
    if dn_order:
        dn_child = np.asarray(dn_order, dtype=np.int64)
        dn_t = pairs_f[dn_child, parent_arr[dn_child]]            # (Nnr, C, C): pairs[c, parent(c)]
        r_dn = jnp.max(dn_t, axis=-1, keepdims=True)              # (Nnr, C, 1)
        e_dn = jnp.exp(dn_t - r_dn)
        e_dn_stk = e_dn.reshape(len(dn_order) * C, C)             # siblings contiguous -> one matmul/family
        r_dn_stk = r_dn.reshape(len(dn_order) * C, 1)
    else:                                                         # forest with no edges
        e_dn_stk = jnp.ones((C, C), jnp.float32)
        r_dn_stk = jnp.zeros((C, 1), jnp.float32)

    # ---- lane-dense layout: batch padded onto the 128-lane axis
    Bp = max(_LANE, ((B + _LANE - 1) // _LANE) * _LANE)
    x_pad = jnp.pad(x_lcb.astype(jnp.float32), ((0, 0), (0, 0), (0, Bp - B)))

    # ---- batch tile from a VMEM budget; keep >=2 grid steps when possible
    #      (pipelining on all chips, second TensorCore on v7x via "parallel").
    const_bytes = 4 * 2 * (e_up.size + r_up.size + e_dn_stk.size + r_dn_stk.size)

    def need(bt):  # x + out tiles double-buffered + resident transition tensors
        return const_bytes + 4 * 2 * 2 * L * C * bt

    budget = 24 * 2 ** 20
    cands = [w for w in range(_LANE, Bp + 1, _LANE) if Bp % w == 0 and need(w) <= budget]
    if not cands:
        cands = [_LANE]
    Bt = max(cands)
    if Bp // Bt < 2:
        two = [w for w in cands if Bp // w >= 2]
        if two:
            Bt = max(two)

    kernel = _make_treecrf_kernel(levels, children, up_schedule, dn_schedule, dn_pos, C)

    grid_spec = pltpu.PrefetchScalarGridSpec(
        num_scalar_prefetch=0,
        grid=(Bp // Bt,),
        in_specs=[
            pl.BlockSpec((L, C, Bt), lambda b: (0, 0, b)),        # emissions, tiled over batch
            pl.BlockSpec(e_up.shape, lambda b: (0, 0, 0)),        # exp(up_trans - rowmax), resident
            pl.BlockSpec(r_up.shape, lambda b: (0, 0, 0)),        # rowmax(up_trans), resident
            pl.BlockSpec(e_dn_stk.shape, lambda b: (0, 0)),       # stacked exp(down_trans - rowmax)
            pl.BlockSpec(r_dn_stk.shape, lambda b: (0, 0)),       # stacked rowmax(down_trans)
        ],
        out_specs=pl.BlockSpec((L, C, Bt), lambda b: (0, 0, b)),
    )

    out_lcb = pl.pallas_call(
        kernel,
        out_shape=jax.ShapeDtypeStruct((L, C, Bp), jnp.float32),
        grid_spec=grid_spec,
        compiler_params=pltpu.CompilerParams(
            dimension_semantics=("parallel",),                    # batch tiles are independent
            vmem_limit_bytes=int(min(48 * 2 ** 20, max(32 * 2 ** 20, 2 * need(Bt)))),
        ),
    )(x_pad, e_up, r_up, e_dn_stk, r_dn_stk)

    return out_lcb[:, :, :B]


def treecrf_forward(X_bcl, pairs, parent_np):
    """X_bcl: (B, C, L) emissions (PyTorch layout); pairs: (L, L, C, C); parent: (L,), -1 = root.

    NOTE: the two transposes below are full HBM passes done by XLA; callers that can keep
    emissions resident in the (L, C, B) layout should call treecrf_forward_lcb directly.
    """
    x_lcb = jnp.transpose(X_bcl, (2, 1, 0))
    out_lcb = treecrf_forward_lcb(x_lcb, pairs, parent_np)
    return jnp.transpose(out_lcb, (2, 1, 0))


# ----------------------------------------------------------------------------- reference
def treecrf_reference(X_bcl, pairs, parent_np):
    """Pure-NumPy translation of TreeCRFLayer.forward (tree: one parent per node)."""
    X = np.asarray(jax.device_get(X_bcl), dtype=np.float32)
    P = np.asarray(jax.device_get(pairs), dtype=np.float32)
    parent = np.asarray(parent_np).reshape(-1)
    B, C, L = X.shape
    levels = _build_schedules([int(p) for p in parent])[0]
    order = [i for lvl in levels for i in lvl]                    # parents before children

    def lse_last(t):
        m = t.max(axis=-1, keepdims=True)
        return (m + np.log(np.exp(t - m).sum(axis=-1, keepdims=True)))[..., 0]

    alphas = np.zeros((B, C, L), dtype=np.float32)
    for j in reversed(order):                                     # upward: leaves -> roots
        p = parent[j]
        if p >= 0:
            local = X[:, :, j] + alphas[:, :, j]                  # (B, C_j)
            trans = P[p, j]                                       # (C_p, C_j)
            alphas[:, :, p] += lse_last(trans[None] + local[:, None, :])

    betas = np.zeros((B, C, L), dtype=np.float32)
    for c in order:                                               # downward: roots -> leaves
        p = parent[c]
        if p >= 0:
            local = X[:, :, p] + betas[:, :, p]                   # (B, C_p)
            trans = P[c, p]                                       # (C_c, C_p)
            betas[:, :, c] += lse_last(trans[None] + local[:, None, :])

    scores = X + alphas + betas
    m = scores.max(axis=1, keepdims=True)
    logZ = m + np.log(np.exp(scores - m).sum(axis=1, keepdims=True))
    return scores - logZ


# TODO(synk): TreeCRFLayer._free_energy references undefined globals (`classes`, `DEVICE`,
# `self.parents`) in the original source and is not used by forward(); not implemented.
# TODO(synk): multi-parent (non-forest) adjacency is not supported; one parent per node assumed.

# ----------------------------------------------------------------------------- main
if __name__ == "__main__":
    B, C, L = 4, 4, 8                               # batch, n_classes, n_labels
    # Tree: node 0 is the root; parent[i] = -1 for roots.
    parent = np.array([-1, 0, 0, 1, 1, 2, 2, 3], dtype=np.int32)

    key = jax.random.PRNGKey(0)
    kx, kp = jax.random.split(key)
    X = jax.random.normal(kx, (B, C, L), dtype=jnp.float32)                 # emissions (log-space)
    pairs = 0.1 * jax.random.normal(kp, (L, L, C, C), dtype=jnp.float32)    # CRF pair potentials

    fwd = jax.jit(lambda x, pr: treecrf_forward(x, pr, parent))             # fully traceable now
    logP = jax.block_until_ready(fwd(X, pairs))

    ref = treecrf_reference(X, pairs, parent)
    np.testing.assert_allclose(np.asarray(logP), ref, atol=1e-4, rtol=1e-4)
    assert np.max(np.asarray(logP)) <= 1e-5, "log-probabilities must be <= 0"
    print("KERNEL_OK")
</pallas_src>

<mosaic_0001>
module attributes {stable_mosaic.version = 11 : i64} {
  func.func @kernel(%arg0: i32, %arg1: memref<8x4x128xf32, #tpu.memory_space<vmem>>, %arg2: memref<8x4x4xf32, #tpu.memory_space<vmem>>, %arg3: memref<8x4x1xf32, #tpu.memory_space<vmem>>, %arg4: memref<28x4xf32, #tpu.memory_space<vmem>>, %arg5: memref<28x1xf32, #tpu.memory_space<vmem>>, %arg6: memref<8x4x128xf32, #tpu.memory_space<vmem>>) attributes {dimension_semantics = [#tpu.dimension_semantics<parallel>], iteration_bounds = array<i64: 1>, scalar_prefetch = 0 : i64, scratch_operands = 0 : i64, tpu.core_type = #tpu.core_type<tc>, window_params = [{transform_indices = @transform_0, window_bounds = array<i64: 8, 4, 128>}, {pipeline_mode = #tpu.pipeline_mode<synchronous>, transform_indices = @transform_1, window_bounds = array<i64: 8, 4, 4>}, {pipeline_mode = #tpu.pipeline_mode<synchronous>, transform_indices = @transform_2, window_bounds = array<i64: 8, 4, 1>}, {pipeline_mode = #tpu.pipeline_mode<synchronous>, transform_indices = @transform_3, window_bounds = array<i64: 28, 4>}, {pipeline_mode = #tpu.pipeline_mode<synchronous>, transform_indices = @transform_4, window_bounds = array<i64: 28, 1>}, {transform_indices = @transform_5, window_bounds = array<i64: 8, 4, 128>}]} {
    %c7 = arith.constant 7 : index
    %c0 = arith.constant 0 : index
    %c0_0 = arith.constant 0 : index
    %0 = vector.load %arg1[%c7, %c0, %c0_0] : memref<8x4x128xf32, #tpu.memory_space<vmem>>, vector<1x4x128xf32>
    %1 = vector.shape_cast %0 : vector<1x4x128xf32> to vector<4x128xf32>
    %cst = arith.constant dense<0xFF800000> : vector<128xf32>
    %2 = vector.multi_reduction <maximumf>, %1, %cst [0] : vector<4x128xf32> to vector<128xf32>
    %3 = vector.shape_cast %2 : vector<128xf32> to vector<1x128xf32>
    %4 = vector.broadcast %3 : vector<1x128xf32> to vector<4x128xf32>
    %5 = arith.subf %1, %4 : vector<4x128xf32>
    %6 = math.exp %5 : vector<4x128xf32>
    %c7_1 = arith.constant 7 : index
    %c0_2 = arith.constant 0 : index
    %c0_3 = arith.constant 0 : index
    %7 = vector.load %arg2[%c7_1, %c0_2, %c0_3] : memref<8x4x4xf32, #tpu.memory_space<vmem>>, vector<1x4x4xf32>
    %8 = vector.shape_cast %7 : vector<1x4x4xf32> to vector<4x4xf32>
    %cst_4 = arith.constant dense<0.000000e+00> : vector<4x128xf32>
    %9 = tpu.matmul %8, %6, %cst_4 {dimension_numbers = #tpu.dot_dimension_numbers<[1], [0], [0], [1], [0, 0, 1, 1], [], []>} : vector<4x4xf32>, vector<4x128xf32>, vector<4x128xf32> -> vector<4x128xf32>
    %c7_5 = arith.constant 7 : index
    %c0_6 = arith.constant 0 : index
    %c0_7 = arith.constant 0 : index
    %10 = vector.load %arg3[%c7_5, %c0_6, %c0_7] : memref<8x4x1xf32, #tpu.memory_space<vmem>>, vector<1x4x1xf32>
    %11 = vector.shape_cast %10 : vector<1x4x1xf32> to vector<4x1xf32>
    %12 = vector.broadcast %11 : vector<4x1xf32> to vector<4x128xf32>
    %13 = vector.broadcast %3 : vector<1x128xf32> to vector<4x128xf32>
    %14 = arith.addf %12, %13 : vector<4x128xf32>
    %cst_8 = arith.constant 1.17549435E-38 : f32
    %15 = vector.broadcast %cst_8 : f32 to vector<4x128xf32>
    %16 = arith.maximumf %9, %15 : vector<4x128xf32>
    %17 = math.log %16 : vector<4x128xf32>
    %18 = arith.addf %14, %17 : vector<4x128xf32>
    %c3 = arith.constant 3 : index
    %c0_9 = arith.constant 0 : index
    %c0_10 = arith.constant 0 : index
    %19 = vector.load %arg1[%c3, %c0_9, %c0_10] : memref<8x4x128xf32, #tpu.memory_space<vmem>>, vector<1x4x128xf32>
    %20 = vector.shape_cast %19 : vector<1x4x128xf32> to vector<4x128xf32>
    %21 = arith.addf %20, %18 : vector<4x128xf32>
    %c3_11 = arith.constant 3 : index
    %c0_12 = arith.constant 0 : index
    %c0_13 = arith.constant 0 : index
    %22 = vector.load %arg6[%c3_11, %c0_12, %c0_13] : memref<8x4x128xf32, #tpu.memory_space<vmem>>, vector<1x4x128xf32>
    %23 = vector.shape_cast %22 : vector<1x4x128xf32> to vector<4x128xf32>
    %24 = vector.shape_cast %21 : vector<4x128xf32> to vector<1x4x128xf32>
    tpu.vector_store %arg6[%c3_11, %c0_12, %c0_13], %24 {strides = array<i32>} : memref<8x4x128xf32, #tpu.memory_space<vmem>>, vector<1x4x128xf32>,
    %c3_14 = arith.constant 3 : index
    %c0_15 = arith.constant 0 : index
    %c0_16 = arith.constant 0 : index
    %25 = vector.load %arg6[%c3_14, %c0_15, %c0_16] : memref<8x4x128xf32, #tpu.memory_space<vmem>>, vector<1x4x128xf32>
    %26 = vector.shape_cast %25 : vector<1x4x128xf32> to vector<4x128xf32>
    %cst_17 = arith.constant dense<0xFF800000> : vector<128xf32>
    %27 = vector.multi_reduction <maximumf>, %26, %cst_17 [0] : vector<4x128xf32> to vector<128xf32>
    %28 = vector.shape_cast %27 : vector<128xf32> to vector<1x128xf32>
    %29 = vector.broadcast %28 : vector<1x128xf32> to vector<4x128xf32>
    %30 = arith.subf %26, %29 : vector<4x128xf32>
    %31 = math.exp %30 : vector<4x128xf32>
    %c3_18 = arith.constant 3 : index
    %c0_19 = arith.constant 0 : index
    %c0_20 = arith.constant 0 : index
    %32 = vector.load %arg2[%c3_18, %c0_19, %c0_20] : memref<8x4x4xf32, #tpu.memory_space<vmem>>, vector<1x4x4xf32>
    %33 = vector.shape_cast %32 : vector<1x4x4xf32> to vector<4x4xf32>
    %cst_21 = arith.constant dense<0.000000e+00> : vector<4x128xf32>
    %34 = tpu.matmul %33, %31, %cst_21 {dimension_numbers = #tpu.dot_dimension_numbers<[1], [0], [0], [1], [0, 0, 1, 1], [], []>} : vector<4x4xf32>, vector<4x128xf32>, vector<4x128xf32> -> vector<4x128xf32>
    %c3_22 = arith.constant 3 : index
    %c0_23 = arith.constant 0 : index
    %c0_24 = arith.constant 0 : index
    %35 = vector.load %arg3[%c3_22, %c0_23, %c0_24] : memref<8x4x1xf32, #tpu.memory_space<vmem>>, vector<1x4x1xf32>
    %36 = vector.shape_cast %35 : vector<1x4x1xf32> to vector<4x1xf32>
    %37 = vector.broadcast %36 : vector<4x1xf32> to vector<4x128xf32>
    %38 = vector.broadcast %28 : vector<1x128xf32> to vector<4x128xf32>
    %39 = arith.addf %37, %38 : vector<4x128xf32>
    %cst_25 = arith.constant 1.17549435E-38 : f32
    %40 = vector.broadcast %cst_25 : f32 to vector<4x128xf32>
    %41 = arith.maximumf %34, %40 : vector<4x128xf32>
    %42 = math.log %41 : vector<4x128xf32>
    %43 = arith.addf %39, %42 : vector<4x128xf32>
    %c4 = arith.constant 4 : index
    %c0_26 = arith.constant 0 : index
    %c0_27 = arith.constant 0 : index
    %44 = vector.load %arg1[%c4, %c0_26, %c0_27] : memref<8x4x128xf32, #tpu.memory_space<vmem>>, vector<1x4x128xf32>
    %45 = vector.shape_cast %44 : vector<1x4x128xf32> to vector<4x128xf32>
    %cst_28 = arith.constant dense<0xFF800000> : vector<128xf32>
    %46 = vector.multi_reduction <maximumf>, %45, %cst_28 [0] : vector<4x128xf32> to vector<128xf32>
    %47 = vector.shape_cast %46 : vector<128xf32> to vector<1x128xf32>
    %48 = vector.broadcast %47 : vector<1x128xf32> to vector<4x128xf32>
    %49 = arith.subf %45, %48 : vector<4x128xf32>
    %50 = math.exp %49 : vector<4x128xf32>
    %c4_29 = arith.constant 4 : index
    %c0_30 = arith.constant 0 : index
    %c0_31 = arith.constant 0 : index
    %51 = vector.load %arg2[%c4_29, %c0_30, %c0_31] : memref<8x4x4xf32, #tpu.memory_space<vmem>>, vector<1x4x4xf32>
    %52 = vector.shape_cast %51 : vector<1x4x4xf32> to vector<4x4xf32>
    %cst_32 = arith.constant dense<0.000000e+00> : vector<4x128xf32>
    %53 = tpu.matmul %52, %50, %cst_32 {dimension_numbers = #tpu.dot_dimension_numbers<[1], [0], [0], [1], [0, 0, 1, 1], [], []>} : vector<4x4xf32>, vector<4x128xf32>, vector<4x128xf32> -> vector<4x128xf32>
    %c4_33 = arith.constant 4 : index
    %c0_34 = arith.constant 0 : index
    %c0_35 = arith.constant 0 : index
    %54 = vector.load %arg3[%c4_33, %c0_34, %c0_35] : memref<8x4x1xf32, #tpu.memory_space<vmem>>, vector<1x4x1xf32>
    %55 = vector.shape_cast %54 : vector<1x4x1xf32> to vector<4x1xf32>
    %56 = vector.broadcast %55 : vector<4x1xf32> to vector<4x128xf32>
    %57 = vector.broadcast %47 : vector<1x128xf32> to vector<4x128xf32>
    %58 = arith.addf %56, %57 : vector<4x128xf32>
    %cst_36 = arith.constant 1.17549435E-38 : f32
    %59 = vector.broadcast %cst_36 : f32 to vector<4x128xf32>
    %60 = arith.maximumf %53, %59 : vector<4x128xf32>
    %61 = math.log %60 : vector<4x128xf32>
    %62 = arith.addf %58, %61 : vector<4x128xf32>
    %63 = arith.addf %43, %62 : vector<4x128xf32>
    %c1 = arith.constant 1 : index
    %c0_37 = arith.constant 0 : index
    %c0_38 = arith.constant 0 : index
    %64 = vector.load %arg1[%c1, %c0_37, %c0_38] : memref<8x4x128xf32, #tpu.memory_space<vmem>>, vector<1x4x128xf32>
    %65 = vector.shape_cast %64 : vector<1x4x128xf32> to vector<4x128xf32>
    %66 = arith.addf %65, %63 : vector<4x128xf32>
    %c1_39 = arith.constant 1 : index
    %c0_40 = arith.constant 0 : index
    %c0_41 = arith.constant 0 : index
    %67 = vector.load %arg6[%c1_39, %c0_40, %c0_41] : memref<8x4x128xf32, #tpu.memory_space<vmem>>, vector<1x4x128xf32>
    %68 = vector.shape_cast %67 : vector<1x4x128xf32> to vector<4x128xf32>
    %69 = vector.shape_cast %66 : vector<4x128xf32> to vector<1x4x128xf32>
    tpu.vector_store %arg6[%c1_39, %c0_40, %c0_41], %69 {strides = array<i32>} : memref<8x4x128xf32, #tpu.memory_space<vmem>>, vector<1x4x128xf32>,
    %c5 = arith.constant 5 : index
    %c0_42 = arith.constant 0 : index
    %c0_43 = arith.constant 0 : index
    %70 = vector.load %arg1[%c5, %c0_42, %c0_43] : memref<8x4x128xf32, #tpu.memory_space<vmem>>, vector<1x4x128xf32>
    %71 = vector.shape_cast %70 : vector<1x4x128xf32> to vector<4x128xf32>
    %cst_44 = arith.constant dense<0xFF800000> : vector<128xf32>
    %72 = vector.multi_reduction <maximumf>, %71, %cst_44 [0] : vector<4x128xf32> to vector<128xf32>
    %73 = vector.shape_cast %72 : vector<128xf32> to vector<1x128xf32>
    %74 = vector.broadcast %73 : vector<1x128xf32> to vector<4x128xf32>
    %75 = arith.subf %71, %74 : vector<4x128xf32>
    %76 = math.exp %75 : vector<4x128xf32>
    %c5_45 = arith.constant 5 : index
    %c0_46 = arith.constant 0 : index
    %c0_47 = arith.constant 0 : index
    %77 = vector.load %arg2[%c5_45, %c0_46, %c0_47] : memref<8x4x4xf32, #tpu.memory_space<vmem>>, vector<1x4x4xf32>
    %78 = vector.shape_cast %77 : vector<1x4x4xf32> to vector<4x4xf32>
    %cst_48 = arith.constant dense<0.000000e+00> : vector<4x128xf32>
    %79 = tpu.matmul %78, %76, %cst_48 {dimension_numbers = #tpu.dot_dimension_numbers<[1], [0], [0], [1], [0, 0, 1, 1], [], []>} : vector<4x4xf32>, vector<4x128xf32>, vector<4x128xf32> -> vector<4x128xf32>
    %c5_49 = arith.constant 5 : index
    %c0_50 = arith.constant 0 : index
    %c0_51 = arith.constant 0 : index
    %80 = vector.load %arg3[%c5_49, %c0_50, %c0_51] : memref<8x4x1xf32, #tpu.memory_space<vmem>>, vector<1x4x1xf32>
    %81 = vector.shape_cast %80 : vector<1x4x1xf32> to vector<4x1xf32>
    %82 = vector.broadcast %81 : vector<4x1xf32> to vector<4x128xf32>
    %83 = vector.broadcast %73 : vector<1x128xf32> to vector<4x128xf32>
    %84 = arith.addf %82, %83 : vector<4x128xf32>
    %cst_52 = arith.constant 1.17549435E-38 : f32
    %85 = vector.broadcast %cst_52 : f32 to vector<4x128xf32>
    %86 = arith.maximumf %79, %85 : vector<4x128xf32>
    %87 = math.log %86 : vector<4x128xf32>
    %88 = arith.addf %84, %87 : vector<4x128xf32>
    %c6 = arith.constant 6 : index
    %c0_53 = arith.constant 0 : index
    %c0_54 = arith.constant 0 : index
    %89 = vector.load %arg1[%c6, %c0_53, %c0_54] : memref<8x4x128xf32, #tpu.memory_space<vmem>>, vector<1x4x128xf32>
    %90 = vector.shape_cast %89 : vector<1x4x128xf32> to vector<4x128xf32>
    %cst_55 = arith.constant dense<0xFF800000> : vector<128xf32>
    %91 = vector.multi_reduction <maximumf>, %90, %cst_55 [0] : vector<4x128xf32> to vector<128xf32>
    %92 = vector.shape_cast %91 : vector<128xf32> to vector<1x128xf32>
    %93 = vector.broadcast %92 : vector<1x128xf32> to vector<4x128xf32>
    %94 = arith.subf %90, %93 : vector<4x128xf32>
    %95 = math.exp %94 : vector<4x128xf32>
    %c6_56 = arith.constant 6 : index
    %c0_57 = arith.constant 0 : index
    %c0_58 = arith.constant 0 : index
    %96 = vector.load %arg2[%c6_56, %c0_57, %c0_58] : memref<8x4x4xf32, #tpu.memory_space<vmem>>, vector<1x4x4xf32>
    %97 = vector.shape_cast %96 : vector<1x4x4xf32> to vector<4x4xf32>
    %cst_59 = arith.constant dense<0.000000e+00> : vector<4x128xf32>
    %98 = tpu.matmul %97, %95, %cst_59 {dimension_numbers = #tpu.dot_dimension_numbers<[1], [0], [0], [1], [0, 0, 1, 1], [], []>} : vector<4x4xf32>, vector<4x128xf32>, vector<4x128xf32> -> vector<4x128xf32>
    %c6_60 = arith.constant 6 : index
    %c0_61 = arith.constant 0 : index
    %c0_62 = arith.constant 0 : index
    %99 = vector.load %arg3[%c6_60, %c0_61, %c0_62] : memref<8x4x1xf32, #tpu.memory_space<vmem>>, vector<1x4x1xf32>
    %100 = vector.shape_cast %99 : vector<1x4x1xf32> to vector<4x1xf32>
    %101 = vector.broadcast %100 : vector<4x1xf32> to vector<4x128xf32>
    %102 = vector.broadcast %92 : vector<1x128xf32> to vector<4x128xf32>
    %103 = arith.addf %101, %102 : vector<4x128xf32>
    %cst_63 = arith.constant 1.17549435E-38 : f32
    %104 = vector.broadcast %cst_63 : f32 to vector<4x128xf32>
    %105 = arith.maximumf %98, %104 : vector<4x128xf32>
    %106 = math.log %105 : vector<4x128xf32>
    %107 = arith.addf %103, %106 : vector<4x128xf32>
    %108 = arith.addf %88, %107 : vector<4x128xf32>
    %c2 = arith.constant 2 : index
    %c0_64 = arith.constant 0 : index
    %c0_65 = arith.constant 0 : index
    %109 = vector.load %arg1[%c2, %c0_64, %c0_65] : memref<8x4x128xf32, #tpu.memory_space<vmem>>, vector<1x4x128xf32>
    %110 = vector.shape_cast %109 : vector<1x4x128xf32> to vector<4x128xf32>
    %111 = arith.addf %110, %108 : vector<4x128xf32>
    %c2_66 = arith.constant 2 : index
    %c0_67 = arith.constant 0 : index
    %c0_68 = arith.constant 0 : index
    %112 = vector.load %arg6[%c2_66, %c0_67, %c0_68] : memref<8x4x128xf32, #tpu.memory_space<vmem>>, vector<1x4x128xf32>
    %113 = vector.shape_cast %112 : vector<1x4x128xf32> to vector<4x128xf32>
    %114 = vector.shape_cast %111 : vector<4x128xf32> to vector<1x4x128xf32>
    tpu.vector_store %arg6[%c2_66, %c0_67, %c0_68], %114 {strides = array<i32>} : memref<8x4x128xf32, #tpu.memory_space<vmem>>, vector<1x4x128xf32>,
    %c1_69 = arith.constant 1 : index
    %c0_70 = arith.constant 0 : index
    %c0_71 = arith.constant 0 : index
    %115 = vector.load %arg6[%c1_69, %c0_70, %c0_71] : memref<8x4x128xf32, #tpu.memory_space<vmem>>, vector<1x4x128xf32>
    %116 = vector.shape_cast %115 : vector<1x4x128xf32> to vector<4x128xf32>
    %cst_72 = arith.constant dense<0xFF800000> : vector<128xf32>
    %117 = vector.multi_reduction <maximumf>, %116, %cst_72 [0] : vector<4x128xf32> to vector<128xf32>
    %118 = vector.shape_cast %117 : vector<128xf32> to vector<1x128xf32>
    %119 = vector.broadcast %118 : vector<1x128xf32> to vector<4x128xf32>
    %120 = arith.subf %116, %119 : vector<4x128xf32>
    %121 = math.exp %120 : vector<4x128xf32>
    %c1_73 = arith.constant 1 : index
    %c0_74 = arith.constant 0 : index
    %c0_75 = arith.constant 0 : index
    %122 = vector.load %arg2[%c1_73, %c0_74, %c0_75] : memref<8x4x4xf32, #tpu.memory_space<vmem>>, vector<1x4x4xf32>
    %123 = vector.shape_cast %122 : vector<1x4x4xf32> to vector<4x4xf32>
    %cst_76 = arith.constant dense<0.000000e+00> : vector<4x128xf32>
    %124 = tpu.matmul %123, %121, %cst_76 {dimension_numbers = #tpu.dot_dimension_numbers<[1], [0], [0], [1], [0, 0, 1, 1], [], []>} : vector<4x4xf32>, vector<4x128xf32>, vector<4x128xf32> -> vector<4x128xf32>
    %c1_77 = arith.constant 1 : index
    %c0_78 = arith.constant 0 : index
    %c0_79 = arith.constant 0 : index
    %125 = vector.load %arg3[%c1_77, %c0_78, %c0_79] : memref<8x4x1xf32, #tpu.memory_space<vmem>>, vector<1x4x1xf32>
    %126 = vector.shape_cast %125 : vector<1x4x1xf32> to vector<4x1xf32>
    %127 = vector.broadcast %126 : vector<4x1xf32> to vector<4x128xf32>
    %128 = vector.broadcast %118 : vector<1x128xf32> to vector<4x128xf32>
    %129 = arith.addf %127, %128 : vector<4x128xf32>
    %cst_80 = arith.constant 1.17549435E-38 : f32
    %130 = vector.broadcast %cst_80 : f32 to vector<4x128xf32>
    %131 = arith.maximumf %124, %130 : vector<4x128xf32>
    %132 = math.log %131 : vector<4x128xf32>
    %133 = arith.addf %129, %132 : vector<4x128xf32>
    %c2_81 = arith.constant 2 : index
    %c0_82 = arith.constant 0 : index
    %c0_83 = arith.constant 0 : index
    %134 = vector.load %arg6[%c2_81, %c0_82, %c0_83] : memref<8x4x128xf32, #tpu.memory_space<vmem>>, vector<1x4x128xf32>
    %135 = vector.shape_cast %134 : vector<1x4x128xf32> to vector<4x128xf32>
    %cst_84 = arith.constant dense<0xFF800000> : vector<128xf32>
    %136 = vector.multi_reduction <maximumf>, %135, %cst_84 [0] : vector<4x128xf32> to vector<128xf32>
    %137 = vector.shape_cast %136 : vector<128xf32> to vector<1x128xf32>
    %138 = vector.broadcast %137 : vector<1x128xf32> to vector<4x128xf32>
    %139 = arith.subf %135, %138 : vector<4x128xf32>
    %140 = math.exp %139 : vector<4x128xf32>
    %c2_85 = arith.constant 2 : index
    %c0_86 = arith.constant 0 : index
    %c0_87 = arith.constant 0 : index
    %141 = vector.load %arg2[%c2_85, %c0_86, %c0_87] : memref<8x4x4xf32, #tpu.memory_space<vmem>>, vector<1x4x4xf32>
    %142 = vector.shape_cast %141 : vector<1x4x4xf32> to vector<4x4xf32>
    %cst_88 = arith.constant dense<0.000000e+00> : vector<4x128xf32>
    %143 = tpu.matmul %142, %140, %cst_88 {dimension_numbers = #tpu.dot_dimension_numbers<[1], [0], [0], [1], [0, 0, 1, 1], [], []>} : vector<4x4xf32>, vector<4x128xf32>, vector<4x128xf32> -> vector<4x128xf32>
    %c2_89 = arith.constant 2 : index
    %c0_90 = arith.constant 0 : index
    %c0_91 = arith.constant 0 : index
    %144 = vector.load %arg3[%c2_89, %c0_90, %c0_91] : memref<8x4x1xf32, #tpu.memory_space<vmem>>, vector<1x4x1xf32>
    %145 = vector.shape_cast %144 : vector<1x4x1xf32> to vector<4x1xf32>
    %146 = vector.broadcast %145 : vector<4x1xf32> to vector<4x128xf32>
    %147 = vector.broadcast %137 : vector<1x128xf32> to vector<4x128xf32>
    %148 = arith.addf %146, %147 : vector<4x128xf32>
    %cst_92 = arith.constant 1.17549435E-38 : f32
    %149 = vector.broadcast %cst_92 : f32 to vector<4x128xf32>
    %150 = arith.maximumf %143, %149 : vector<4x128xf32>
    %151 = math.log %150 : vector<4x128xf32>
    %152 = arith.addf %148, %151 : vector<4x128xf32>
    %153 = arith.addf %133, %152 : vector<4x128xf32>
    %c0_93 = arith.constant 0 : index
    %c0_94 = arith.constant 0 : index
    %c0_95 = arith.constant 0 : index
    %154 = vector.load %arg1[%c0_93, %c0_94, %c0_95] : memref<8x4x128xf32, #tpu.memory_space<vmem>>, vector<1x4x128xf32>
    %155 = vector.shape_cast %154 : vector<1x4x128xf32> to vector<4x128xf32>
    %156 = arith.addf %155, %153 : vector<4x128xf32>
    %c0_96 = arith.constant 0 : index
    %c0_97 = arith.constant 0 : index
    %c0_98 = arith.constant 0 : index
    %157 = vector.load %arg6[%c0_96, %c0_97, %c0_98] : memref<8x4x128xf32, #tpu.memory_space<vmem>>, vector<1x4x128xf32>
    %158 = vector.shape_cast %157 : vector<1x4x128xf32> to vector<4x128xf32>
    %159 = vector.shape_cast %156 : vector<4x128xf32> to vector<1x4x128xf32>
    tpu.vector_store %arg6[%c0_96, %c0_97, %c0_98], %159 {strides = array<i32>} : memref<8x4x128xf32, #tpu.memory_space<vmem>>, vector<1x4x128xf32>,
    %c0_99 = arith.constant 0 : index
    %c0_100 = arith.constant 0 : index
    %c0_101 = arith.constant 0 : index
    %160 = vector.load %arg6[%c0_99, %c0_100, %c0_101] : memref<8x4x128xf32, #tpu.memory_space<vmem>>, vector<1x4x128xf32>
    %161 = vector.shape_cast %160 : vector<1x4x128xf32> to vector<4x128xf32>
    %cst_102 = arith.constant dense<0xFF800000> : vector<128xf32>
    %162 = vector.multi_reduction <maximumf>, %161, %cst_102 [0] : vector<4x128xf32> to vector<128xf32>
    %163 = vector.shape_cast %162 : vector<128xf32> to vector<1x128xf32>
    %164 = vector.broadcast %163 : vector<1x128xf32> to vector<4x128xf32>
    %165 = arith.subf %161, %164 : vector<4x128xf32>
    %166 = math.exp %165 : vector<4x128xf32>
    %cst_103 = arith.constant dense<0.000000e+00> : vector<128xf32>
    %167 = vector.multi_reduction <add>, %166, %cst_103 [0] : vector<4x128xf32> to vector<128xf32>
    %168 = vector.shape_cast %167 : vector<128xf32> to vector<1x128xf32>
    %169 = math.log %168 : vector<1x128xf32>
    %170 = arith.addf %163, %169 : vector<1x128xf32>
    %171 = vector.broadcast %170 : vector<1x128xf32> to vector<4x128xf32>
    %172 = arith.subf %161, %171 : vector<4x128xf32>
    %c0_104 = arith.constant 0 : index
    %c0_105 = arith.constant 0 : index
    %c0_106 = arith.constant 0 : index
    %173 = vector.load %arg6[%c0_104, %c0_105, %c0_106] : memref<8x4x128xf32, #tpu.memory_space<vmem>>, vector<1x4x128xf32>
    %174 = vector.shape_cast %173 : vector<1x4x128xf32> to vector<4x128xf32>
    %175 = vector.shape_cast %172 : vector<4x128xf32> to vector<1x4x128xf32>
    tpu.vector_store %arg6[%c0_104, %c0_105, %c0_106], %175 {strides = array<i32>} : memref<8x4x128xf32, #tpu.memory_space<vmem>>, vector<1x4x128xf32>,
    %c0_107 = arith.constant 0 : index
    %c0_108 = arith.constant 0 : index
    %c0_109 = arith.constant 0 : index
    %176 = vector.load %arg1[%c0_107, %c0_108, %c0_109] : memref<8x4x128xf32, #tpu.memory_space<vmem>>, vector<1x4x128xf32>
    %177 = vector.shape_cast %176 : vector<1x4x128xf32> to vector<4x128xf32>
    %cst_110 = arith.constant dense<0xFF800000> : vector<128xf32>
    %178 = vector.multi_reduction <maximumf>, %177, %cst_110 [0] : vector<4x128xf32> to vector<128xf32>
    %179 = vector.shape_cast %178 : vector<128xf32> to vector<1x128xf32>
    %180 = vector.broadcast %179 : vector<1x128xf32> to vector<4x128xf32>
    %181 = arith.subf %177, %180 : vector<4x128xf32>
    %182 = math.exp %181 : vector<4x128xf32>
    %c0_111 = arith.constant 0 : index
    %c0_112 = arith.constant 0 : index
    %183 = vector.load %arg4[%c0_111, %c0_112] : memref<28x4xf32, #tpu.memory_space<vmem>>, vector<8x4xf32>
    %cst_113 = arith.constant dense<0.000000e+00> : vector<8x128xf32>
    %184 = tpu.matmul %183, %182, %cst_113 {dimension_numbers = #tpu.dot_dimension_numbers<[1], [0], [0], [1], [0, 0, 1, 1], [], []>} : vector<8x4xf32>, vector<4x128xf32>, vector<8x128xf32> -> vector<8x128xf32>
    %c0_114 = arith.constant 0 : index
    %c0_115 = arith.constant 0 : index
    %185 = vector.load %arg5[%c0_114, %c0_115] : memref<28x1xf32, #tpu.memory_space<vmem>>, vector<8x1xf32>
    %186 = vector.broadcast %185 : vector<8x1xf32> to vector<8x128xf32>
    %187 = vector.broadcast %179 : vector<1x128xf32> to vector<8x128xf32>
    %188 = arith.addf %186, %187 : vector<8x128xf32>
    %cst_116 = arith.constant 1.17549435E-38 : f32
    %189 = vector.broadcast %cst_116 : f32 to vector<8x128xf32>
    %190 = arith.maximumf %184, %189 : vector<8x128xf32>
    %191 = math.log %190 : vector<8x128xf32>
    %192 = arith.addf %188, %191 : vector<8x128xf32>
    %193 = vector.extract_strided_slice %192 {offsets = [0, 0], sizes = [4, 128], strides = [1, 1]} : vector<8x128xf32> to vector<4x128xf32>
    %c1_117 = arith.constant 1 : index
    %c0_118 = arith.constant 0 : index
    %c0_119 = arith.constant 0 : index
    %194 = vector.load %arg6[%c1_117, %c0_118, %c0_119] : memref<8x4x128xf32, #tpu.memory_space<vmem>>, vector<1x4x128xf32>
    %195 = vector.shape_cast %194 : vector<1x4x128xf32> to vector<4x128xf32>
    %196 = arith.addf %195, %193 : vector<4x128xf32>
    %cst_120 = arith.constant dense<0xFF800000> : vector<128xf32>
    %197 = vector.multi_reduction <maximumf>, %196, %cst_120 [0] : vector<4x128xf32> to vector<128xf32>
    %198 = vector.shape_cast %197 : vector<128xf32> to vector<1x128xf32>
    %199 = vector.broadcast %198 : vector<1x128xf32> to vector<4x128xf32>
    %200 = arith.subf %196, %199 : vector<4x128xf32>
    %201 = math.exp %200 : vector<4x128xf32>
    %cst_121 = arith.constant dense<0.000000e+00> : vector<128xf32>
    %202 = vector.multi_reduction <add>, %201, %cst_121 [0] : vector<4x128xf32> to vector<128xf32>
    %203 = vector.shape_cast %202 : vector<128xf32> to vector<1x128xf32>
    %204 = math.log %203 : vector<1x128xf32>
    %205 = arith.addf %198, %204 : vector<1x128xf32>
    %206 = vector.broadcast %205 : vector<1x128xf32> to vector<4x128xf32>
    %207 = arith.subf %196, %206 : vector<4x128xf32>
    %c1_122 = arith.constant 1 : index
    %c0_123 = arith.constant 0 : index
    %c0_124 = arith.constant 0 : index
    %208 = vector.load %arg6[%c1_122, %c0_123, %c0_124] : memref<8x4x128xf32, #tpu.memory_space<vmem>>, vector<1x4x128xf32>
    %209 = vector.shape_cast %208 : vector<1x4x128xf32> to vector<4x128xf32>
    %210 = vector.shape_cast %207 : vector<4x128xf32> to vector<1x4x128xf32>
    tpu.vector_store %arg6[%c1_122, %c0_123, %c0_124], %210 {strides = array<i32>} : memref<8x4x128xf32, #tpu.memory_space<vmem>>, vector<1x4x128xf32>,
    %211 = vector.extract_strided_slice %192 {offsets = [4, 0], sizes = [4, 128], strides = [1, 1]} : vector<8x128xf32> to vector<4x128xf32>
    %c2_125 = arith.constant 2 : index
    %c0_126 = arith.constant 0 : index
    %c0_127 = arith.constant 0 : index
    %212 = vector.load %arg6[%c2_125, %c0_126, %c0_127] : memref<8x4x128xf32, #tpu.memory_space<vmem>>, vector<1x4x128xf32>
    %213 = vector.shape_cast %212 : vector<1x4x128xf32> to vector<4x128xf32>
    %214 = arith.addf %213, %211 : vector<4x128xf32>
    %cst_128 = arith.constant dense<0xFF800000> : vector<128xf32>
    %215 = vector.multi_reduction <maximumf>, %214, %cst_128 [0] : vector<4x128xf32> to vector<128xf32>
    %216 = vector.shape_cast %215 : vector<128xf32> to vector<1x128xf32>
    %217 = vector.broadcast %216 : vector<1x128xf32> to vector<4x128xf32>
    %218 = arith.subf %214, %217 : vector<4x128xf32>
    %219 = math.exp %218 : vector<4x128xf32>
    %cst_129 = arith.constant dense<0.000000e+00> : vector<128xf32>
    %220 = vector.multi_reduction <add>, %219, %cst_129 [0] : vector<4x128xf32> to vector<128xf32>
    %221 = vector.shape_cast %220 : vector<128xf32> to vector<1x128xf32>
    %222 = math.log %221 : vector<1x128xf32>
    %223 = arith.addf %216, %222 : vector<1x128xf32>
    %224 = vector.broadcast %223 : vector<1x128xf32> to vector<4x128xf32>
    %225 = arith.subf %214, %224 : vector<4x128xf32>
    %c2_130 = arith.constant 2 : index
    %c0_131 = arith.constant 0 : index
    %c0_132 = arith.constant 0 : index
    %226 = vector.load %arg6[%c2_130, %c0_131, %c0_132] : memref<8x4x128xf32, #tpu.memory_space<vmem>>, vector<1x4x128xf32>
    %227 = vector.shape_cast %226 : vector<1x4x128xf32> to vector<4x128xf32>
    %228 = vector.shape_cast %225 : vector<4x128xf32> to vector<1x4x128xf32>
    tpu.vector_store %arg6[%c2_130, %c0_131, %c0_132], %228 {strides = array<i32>} : memref<8x4x128xf32, #tpu.memory_space<vmem>>, vector<1x4x128xf32>,
    %c1_133 = arith.constant 1 : index
    %c0_134 = arith.constant 0 : index
    %c0_135 = arith.constant 0 : index
    %229 = vector.load %arg1[%c1_133, %c0_134, %c0_135] : memref<8x4x128xf32, #tpu.memory_space<vmem>>, vector<1x4x128xf32>
    %230 = vector.shape_cast %229 : vector<1x4x128xf32> to vector<4x128xf32>
    %231 = arith.addf %230, %193 : vector<4x128xf32>
    %cst_136 = arith.constant dense<0xFF800000> : vector<128xf32>
    %232 = vector.multi_reduction <maximumf>, %231, %cst_136 [0] : vector<4x128xf32> to vector<128xf32>
    %233 = vector.shape_cast %232 : vector<128xf32> to vector<1x128xf32>
    %234 = vector.broadcast %233 : vector<1x128xf32> to vector<4x128xf32>
    %235 = arith.subf %231, %234 : vector<4x128xf32>
    %236 = math.exp %235 : vector<4x128xf32>
    %c8 = arith.constant 8 : index
    %c0_137 = arith.constant 0 : index
    %237 = vector.load %arg4[%c8, %c0_137] : memref<28x4xf32, #tpu.memory_space<vmem>>, vector<8x4xf32>
    %cst_138 = arith.constant dense<0.000000e+00> : vector<8x128xf32>
    %238 = tpu.matmul %237, %236, %cst_138 {dimension_numbers = #tpu.dot_dimension_numbers<[1], [0], [0], [1], [0, 0, 1, 1], [], []>} : vector<8x4xf32>, vector<4x128xf32>, vector<8x128xf32> -> vector<8x128xf32>
    %c8_139 = arith.constant 8 : index
    %c0_140 = arith.constant 0 : index
    %239 = vector.load %arg5[%c8_139, %c0_140] : memref<28x1xf32, #tpu.memory_space<vmem>>, vector<8x1xf32>
    %240 = vector.broadcast %239 : vector<8x1xf32> to vector<8x128xf32>
    %241 = vector.broadcast %233 : vector<1x128xf32> to vector<8x128xf32>
    %242 = arith.addf %240, %241 : vector<8x128xf32>
    %cst_141 = arith.constant 1.17549435E-38 : f32
    %243 = vector.broadcast %cst_141 : f32 to vector<8x128xf32>
    %244 = arith.maximumf %238, %243 : vector<8x128xf32>
    %245 = math.log %244 : vector<8x128xf32>
    %246 = arith.addf %242, %245 : vector<8x128xf32>
    %247 = vector.extract_strided_slice %246 {offsets = [0, 0], sizes = [4, 128], strides = [1, 1]} : vector<8x128xf32> to vector<4x128xf32>
    %c3_142 = arith.constant 3 : index
    %c0_143 = arith.constant 0 : index
    %c0_144 = arith.constant 0 : index
    %248 = vector.load %arg6[%c3_142, %c0_143, %c0_144] : memref<8x4x128xf32, #tpu.memory_space<vmem>>, vector<1x4x128xf32>
    %249 = vector.shape_cast %248 : vector<1x4x128xf32> to vector<4x128xf32>
    %250 = arith.addf %249, %247 : vector<4x128xf32>
    %cst_145 = arith.constant dense<0xFF800000> : vector<128xf32>
    %251 = vector.multi_reduction <maximumf>, %250, %cst_145 [0] : vector<4x128xf32> to vector<128xf32>
    %252 = vector.shape_cast %251 : vector<128xf32> to vector<1x128xf32>
    %253 = vector.broadcast %252 : vector<1x128xf32> to vector<4x128xf32>
    %254 = arith.subf %250, %253 : vector<4x128xf32>
    %255 = math.exp %254 : vector<4x128xf32>
    %cst_146 = arith.constant dense<0.000000e+00> : vector<128xf32>
    %256 = vector.multi_reduction <add>, %255, %cst_146 [0] : vector<4x128xf32> to vector<128xf32>
    %257 = vector.shape_cast %256 : vector<128xf32> to vector<1x128xf32>
    %258 = math.log %257 : vector<1x128xf32>
    %259 = arith.addf %252, %258 : vector<1x128xf32>
    %260 = vector.broadcast %259 : vector<1x128xf32> to vector<4x128xf32>
    %261 = arith.subf %250, %260 : vector<4x128xf32>
    %c3_147 = arith.constant 3 : index
    %c0_148 = arith.constant 0 : index
    %c0_149 = arith.constant 0 : index
    %262 = vector.load %arg6[%c3_147, %c0_148, %c0_149] : memref<8x4x128xf32, #tpu.memory_space<vmem>>, vector<1x4x128xf32>
    %263 = vector.shape_cast %262 : vector<1x4x128xf32> to vector<4x128xf32>
    %264 = vector.shape_cast %261 : vector<4x128xf32> to vector<1x4x128xf32>
    tpu.vector_store %arg6[%c3_147, %c0_148, %c0_149], %264 {strides = array<i32>} : memref<8x4x128xf32, #tpu.memory_space<vmem>>, vector<1x4x128xf32>,
    %265 = vector.extract_strided_slice %246 {offsets = [4, 0], sizes = [4, 128], strides = [1, 1]} : vector<8x128xf32> to vector<4x128xf32>
    %c4_150 = arith.constant 4 : index
    %c0_151 = arith.constant 0 : index
    %c0_152 = arith.constant 0 : index
    %266 = vector.load %arg1[%c4_150, %c0_151, %c0_152] : memref<8x4x128xf32, #tpu.memory_space<vmem>>, vector<1x4x128xf32>
    %267 = vector.shape_cast %266 : vector<1x4x128xf32> to vector<4x128xf32>
    %268 = arith.addf %267, %265 : vector<4x128xf32>
    %cst_153 = arith.constant dense<0xFF800000> : vector<128xf32>
    %269 = vector.multi_reduction <maximumf>, %268, %cst_153 [0] : vector<4x128xf32> to vector<128xf32>
    %270 = vector.shape_cast %269 : vector<128xf32> to vector<1x128xf32>
    %271 = vector.broadcast %270 : vector<1x128xf32> to vector<4x128xf32>
    %272 = arith.subf %268, %271 : vector<4x128xf32>
    %273 = math.exp %272 : vector<4x128xf32>
    %cst_154 = arith.constant dense<0.000000e+00> : vector<128xf32>
    %274 = vector.multi_reduction <add>, %273, %cst_154 [0] : vector<4x128xf32> to vector<128xf32>
    %275 = vector.shape_cast %274 : vector<128xf32> to vector<1x128xf32>
    %276 = math.log %275 : vector<1x128xf32>
    %277 = arith.addf %270, %276 : vector<1x128xf32>
    %278 = vector.broadcast %277 : vector<1x128xf32> to vector<4x128xf32>
    %279 = arith.subf %268, %278 : vector<4x128xf32>
    %c4_155 = arith.constant 4 : index
    %c0_156 = arith.constant 0 : index
    %c0_157 = arith.constant 0 : index
    %280 = vector.load %arg6[%c4_155, %c0_156, %c0_157] : memref<8x4x128xf32, #tpu.memory_space<vmem>>, vector<1x4x128xf32>
    %281 = vector.shape_cast %280 : vector<1x4x128xf32> to vector<4x128xf32>
    %282 = vector.shape_cast %279 : vector<4x128xf32> to vector<1x4x128xf32>
    tpu.vector_store %arg6[%c4_155, %c0_156, %c0_157], %282 {strides = array<i32>} : memref<8x4x128xf32, #tpu.memory_space<vmem>>, vector<1x4x128xf32>,
    %c2_158 = arith.constant 2 : index
    %c0_159 = arith.constant 0 : index
    %c0_160 = arith.constant 0 : index
    %283 = vector.load %arg1[%c2_158, %c0_159, %c0_160] : memref<8x4x128xf32, #tpu.memory_space<vmem>>, vector<1x4x128xf32>
    %284 = vector.shape_cast %283 : vector<1x4x128xf32> to vector<4x128xf32>
    %285 = arith.addf %284, %211 : vector<4x128xf32>
    %cst_161 = arith.constant dense<0xFF800000> : vector<128xf32>
    %286 = vector.multi_reduction <maximumf>, %285, %cst_161 [0] : vector<4x128xf32> to vector<128xf32>
    %287 = vector.shape_cast %286 : vector<128xf32> to vector<1x128xf32>
    %288 = vector.broadcast %287 : vector<1x128xf32> to vector<4x128xf32>
    %289 = arith.subf %285, %288 : vector<4x128xf32>
    %290 = math.exp %289 : vector<4x128xf32>
    %c16 = arith.constant 16 : index
    %c0_162 = arith.constant 0 : index
    %291 = vector.load %arg4[%c16, %c0_162] : memref<28x4xf32, #tpu.memory_space<vmem>>, vector<8x4xf32>
    %cst_163 = arith.constant dense<0.000000e+00> : vector<8x128xf32>
    %292 = tpu.matmul %291, %290, %cst_163 {dimension_numbers = #tpu.dot_dimension_numbers<[1], [0], [0], [1], [0, 0, 1, 1], [], []>} : vector<8x4xf32>, vector<4x128xf32>, vector<8x128xf32> -> vector<8x128xf32>
    %c16_164 = arith.constant 16 : index
    %c0_165 = arith.constant 0 : index
    %293 = vector.load %arg5[%c16_164, %c0_165] : memref<28x1xf32, #tpu.memory_space<vmem>>, vector<8x1xf32>
    %294 = vector.broadcast %293 : vector<8x1xf32> to vector<8x128xf32>
    %295 = vector.broadcast %287 : vector<1x128xf32> to vector<8x128xf32>
    %296 = arith.addf %294, %295 : vector<8x128xf32>
    %cst_166 = arith.constant 1.17549435E-38 : f32
    %297 = vector.broadcast %cst_166 : f32 to vector<8x128xf32>
    %298 = arith.maximumf %292, %297 : vector<8x128xf32>
    %299 = math.log %298 : vector<8x128xf32>
    %300 = arith.addf %296, %299 : vector<8x128xf32>
    %301 = vector.extract_strided_slice %300 {offsets = [0, 0], sizes = [4, 128], strides = [1, 1]} : vector<8x128xf32> to vector<4x128xf32>
    %c5_167 = arith.constant 5 : index
    %c0_168 = arith.constant 0 : index
    %c0_169 = arith.constant 0 : index
    %302 = vector.load %arg1[%c5_167, %c0_168, %c0_169] : memref<8x4x128xf32, #tpu.memory_space<vmem>>, vector<1x4x128xf32>
    %303 = vector.shape_cast %302 : vector<1x4x128xf32> to vector<4x128xf32>
    %304 = arith.addf %303, %301 : vector<4x128xf32>
    %cst_170 = arith.constant dense<0xFF800000> : vector<128xf32>
    %305 = vector.multi_reduction <maximumf>, %304, %cst_170 [0] : vector<4x128xf32> to vector<128xf32>
    %306 = vector.shape_cast %305 : vector<128xf32> to vector<1x128xf32>
    %307 = vector.broadcast %306 : vector<1x128xf32> to vector<4x128xf32>
    %308 = arith.subf %304, %307 : vector<4x128xf32>
    %309 = math.exp %308 : vector<4x128xf32>
    %cst_171 = arith.constant dense<0.000000e+00> : vector<128xf32>
    %310 = vector.multi_reduction <add>, %309, %cst_171 [0] : vector<4x128xf32> to vector<128xf32>
    %311 = vector.shape_cast %310 : vector<128xf32> to vector<1x128xf32>
    %312 = math.log %311 : vector<1x128xf32>
    %313 = arith.addf %306, %312 : vector<1x128xf32>
    %314 = vector.broadcast %313 : vector<1x128xf32> to vector<4x128xf32>
    %315 = arith.subf %304, %314 : vector<4x128xf32>
    %c5_172 = arith.constant 5 : index
    %c0_173 = arith.constant 0 : index
    %c0_174 = arith.constant 0 : index
    %316 = vector.load %arg6[%c5_172, %c0_173, %c0_174] : memref<8x4x128xf32, #tpu.memory_space<vmem>>, vector<1x4x128xf32>
    %317 = vector.shape_cast %316 : vector<1x4x128xf32> to vector<4x128xf32>
    %318 = vector.shape_cast %315 : vector<4x128xf32> to vector<1x4x128xf32>
    tpu.vector_store %arg6[%c5_172, %c0_173, %c0_174], %318 {strides = array<i32>} : memref<8x4x128xf32, #tpu.memory_space<vmem>>, vector<1x4x128xf32>,
    %319 = vector.extract_strided_slice %300 {offsets = [4, 0], sizes = [4, 128], strides = [1, 1]} : vector<8x128xf32> to vector<4x128xf32>
    %c6_175 = arith.constant 6 : index
    %c0_176 = arith.constant 0 : index
    %c0_177 = arith.constant 0 : index
    %320 = vector.load %arg1[%c6_175, %c0_176, %c0_177] : memref<8x4x128xf32, #tpu.memory_space<vmem>>, vector<1x4x128xf32>
    %321 = vector.shape_cast %320 : vector<1x4x128xf32> to vector<4x128xf32>
    %322 = arith.addf %321, %319 : vector<4x128xf32>
    %cst_178 = arith.constant dense<0xFF800000> : vector<128xf32>
    %323 = vector.multi_reduction <maximumf>, %322, %cst_178 [0] : vector<4x128xf32> to vector<128xf32>
    %324 = vector.shape_cast %323 : vector<128xf32> to vector<1x128xf32>
    %325 = vector.broadcast %324 : vector<1x128xf32> to vector<4x128xf32>
    %326 = arith.subf %322, %325 : vector<4x128xf32>
    %327 = math.exp %326 : vector<4x128xf32>
    %cst_179 = arith.constant dense<0.000000e+00> : vector<128xf32>
    %328 = vector.multi_reduction <add>, %327, %cst_179 [0] : vector<4x128xf32> to vector<128xf32>
    %329 = vector.shape_cast %328 : vector<128xf32> to vector<1x128xf32>
    %330 = math.log %329 : vector<1x128xf32>
    %331 = arith.addf %324, %330 : vector<1x128xf32>
    %332 = vector.broadcast %331 : vector<1x128xf32> to vector<4x128xf32>
    %333 = arith.subf %322, %332 : vector<4x128xf32>
    %c6_180 = arith.constant 6 : index
    %c0_181 = arith.constant 0 : index
    %c0_182 = arith.constant 0 : index
    %334 = vector.load %arg6[%c6_180, %c0_181, %c0_182] : memref<8x4x128xf32, #tpu.memory_space<vmem>>, vector<1x4x128xf32>
    %335 = vector.shape_cast %334 : vector<1x4x128xf32> to vector<4x128xf32>
    %336 = vector.shape_cast %333 : vector<4x128xf32> to vector<1x4x128xf32>
    tpu.vector_store %arg6[%c6_180, %c0_181, %c0_182], %336 {strides = array<i32>} : memref<8x4x128xf32, #tpu.memory_space<vmem>>, vector<1x4x128xf32>,
    %c3_183 = arith.constant 3 : index
    %c0_184 = arith.constant 0 : index
    %c0_185 = arith.constant 0 : index
    %337 = vector.load %arg1[%c3_183, %c0_184, %c0_185] : memref<8x4x128xf32, #tpu.memory_space<vmem>>, vector<1x4x128xf32>
    %338 = vector.shape_cast %337 : vector<1x4x128xf32> to vector<4x128xf32>
    %339 = arith.addf %338, %247 : vector<4x128xf32>
    %cst_186 = arith.constant dense<0xFF800000> : vector<128xf32>
    %340 = vector.multi_reduction <maximumf>, %339, %cst_186 [0] : vector<4x128xf32> to vector<128xf32>
    %341 = vector.shape_cast %340 : vector<128xf32> to vector<1x128xf32>
    %342 = vector.broadcast %341 : vector<1x128xf32> to vector<4x128xf32>
    %343 = arith.subf %339, %342 : vector<4x128xf32>
    %344 = math.exp %343 : vector<4x128xf32>
    %c24 = arith.constant 24 : index
    %c0_187 = arith.constant 0 : index
    %345 = vector.load %arg4[%c24, %c0_187] : memref<28x4xf32, #tpu.memory_space<vmem>>, vector<4x4xf32>
    %cst_188 = arith.constant dense<0.000000e+00> : vector<4x128xf32>
    %346 = tpu.matmul %345, %344, %cst_188 {dimension_numbers = #tpu.dot_dimension_numbers<[1], [0], [0], [1], [0, 0, 1, 1], [], []>} : vector<4x4xf32>, vector<4x128xf32>, vector<4x128xf32> -> vector<4x128xf32>
    %c24_189 = arith.constant 24 : index
    %c0_190 = arith.constant 0 : index
    %347 = vector.load %arg5[%c24_189, %c0_190] : memref<28x1xf32, #tpu.memory_space<vmem>>, vector<4x1xf32>
    %348 = vector.broadcast %347 : vector<4x1xf32> to vector<4x128xf32>
    %349 = vector.broadcast %341 : vector<1x128xf32> to vector<4x128xf32>
    %350 = arith.addf %348, %349 : vector<4x128xf32>
    %cst_191 = arith.constant 1.17549435E-38 : f32
    %351 = vector.broadcast %cst_191 : f32 to vector<4x128xf32>
    %352 = arith.maximumf %346, %351 : vector<4x128xf32>
    %353 = math.log %352 : vector<4x128xf32>
    %354 = arith.addf %350, %353 : vector<4x128xf32>
    %c7_192 = arith.constant 7 : index
    %c0_193 = arith.constant 0 : index
    %c0_194 = arith.constant 0 : index
    %355 = vector.load %arg1[%c7_192, %c0_193, %c0_194] : memref<8x4x128xf32, #tpu.memory_space<vmem>>, vector<1x4x128xf32>
    %356 = vector.shape_cast %355 : vector<1x4x128xf32> to vector<4x128xf32>
    %357 = arith.addf %356, %354 : vector<4x128xf32>
    %cst_195 = arith.constant dense<0xFF800000> : vector<128xf32>
    %358 = vector.multi_reduction <maximumf>, %357, %cst_195 [0] : vector<4x128xf32> to vector<128xf32>
    %359 = vector.shape_cast %358 : vector<128xf32> to vector<1x128xf32>
    %360 = vector.broadcast %359 : vector<1x128xf32> to vector<4x128xf32>
    %361 = arith.subf %357, %360 : vector<4x128xf32>
    %362 = math.exp %361 : vector<4x128xf32>
    %cst_196 = arith.constant dense<0.000000e+00> : vector<128xf32>
    %363 = vector.multi_reduction <add>, %362, %cst_196 [0] : vector<4x128xf32> to vector<128xf32>
    %364 = vector.shape_cast %363 : vector<128xf32> to vector<1x128xf32>
    %365 = math.log %364 : vector<1x128xf32>
    %366 = arith.addf %359, %365 : vector<1x128xf32>
    %367 = vector.broadcast %366 : vector<1x128xf32> to vector<4x128xf32>
    %368 = arith.subf %357, %367 : vector<4x128xf32>
    %c7_197 = arith.constant 7 : index
    %c0_198 = arith.constant 0 : index
    %c0_199 = arith.constant 0 : index
    %369 = vector.load %arg6[%c7_197, %c0_198, %c0_199] : memref<8x4x128xf32, #tpu.memory_space<vmem>>, vector<1x4x128xf32>
    %370 = vector.shape_cast %369 : vector<1x4x128xf32> to vector<4x128xf32>
    %371 = vector.shape_cast %368 : vector<4x128xf32> to vector<1x4x128xf32>
    tpu.vector_store %arg6[%c7_197, %c0_198, %c0_199], %371 {strides = array<i32>} : memref<8x4x128xf32, #tpu.memory_space<vmem>>, vector<1x4x128xf32>,
    return
  }
  func.func @transform_0(%arg0: i32) -> (i32, i32, i32) {
    %c0_i32 = arith.constant 0 : i32
    %c0_i32_0 = arith.constant 0 : i32
    %c0_i32_1 = arith.constant 0 : i32
    return %c0_i32, %c0_i32_0, %arg0 : i32, i32, i32
  }
  func.func @transform_1(%arg0: i32) -> (i32, i32, i32) {
    %c0_i32 = arith.constant 0 : i32
    %c0_i32_0 = arith.constant 0 : i32
    %c0_i32_1 = arith.constant 0 : i32
    %c0_i32_2 = arith.constant 0 : i32
    return %c0_i32, %c0_i32_0, %c0_i32_1 : i32, i32, i32
  }
  func.func @transform_2(%arg0: i32) -> (i32, i32, i32) {
    %c0_i32 = arith.constant 0 : i32
    %c0_i32_0 = arith.constant 0 : i32
    %c0_i32_1 = arith.constant 0 : i32
    %c0_i32_2 = arith.constant 0 : i32
    return %c0_i32, %c0_i32_0, %c0_i32_1 : i32, i32, i32
  }
  func.func @transform_3(%arg0: i32) -> (i32, i32) {
    %c0_i32 = arith.constant 0 : i32
    %c0_i32_0 = arith.constant 0 : i32
    %c0_i32_1 = arith.constant 0 : i32
    return %c0_i32, %c0_i32_0 : i32, i32
  }
  func.func @transform_4(%arg0: i32) -> (i32, i32) {
    %c0_i32 = arith.constant 0 : i32
    %c0_i32_0 = arith.constant 0 : i32
    %c0_i32_1 = arith.constant 0 : i32
    return %c0_i32, %c0_i32_0 : i32, i32
  }
  func.func @transform_5(%arg0: i32) -> (i32, i32, i32) {
    %c0_i32 = arith.constant 0 : i32
    %c0_i32_0 = arith.constant 0 : i32
    %c0_i32_1 = arith.constant 0 : i32
    return %c0_i32, %c0_i32_0, %arg0 : i32, i32, i32
  }
}

</mosaic_0001>

<llo_original>
// kernel: _lambda_.1
$region0: #{_lambda_.1}
  #allocation0 [shape = 'u32[]', space=smem, size = 0x4, offset = 0x4, fixed_abs, tag = 'smem constant byte address 0x4 - core index']
  #allocation1 [shape = 'u32[144,128]{1,0:T(1,128)}', space=vmem, size = 0x12000, scoped, tag = 'internal scratch']
  %s0 = inlined_call_operand.vmem [shape: f32[8,4,128], index: 0, kind: input, shape index: {}]
  %s1 = inlined_call_operand.vmem [shape: f32[8,4,4], index: 1, kind: input, shape index: {}]
  %s2 = inlined_call_operand.vmem [shape: f32[8,4,1], index: 2, kind: input, shape index: {}]
  %s3 = inlined_call_operand.vmem [shape: f32[28,4], index: 3, kind: input, shape index: {}]
  %s4 = inlined_call_operand.vmem [shape: f32[28,1], index: 4, kind: input, shape index: {}]
  %s5 = inlined_call_operand.vmem [shape: f32[8,4,128], index: 5, kind: output, shape index: {}]
  %s6 = sld [smem:[#allocation0]]
  $region30: #{_lambda_.1} parent=0
    _
  %s8 = ssub.s32 1, %s6
  %s9 = scalar_select 0, %s8, %s6
  // Predicated region
  $region2: #{_lambda_.1} parent=0 // pred_check
    _
  $region3: #{_lambda_.1} parent=0 // pred_check_branch
    %11 = sbr.rel (0) target = $region5
  $region4: #{_lambda_.1} parent=0 // pred_region
    _
  $region5: #{_lambda_.1} parent=0 // pred_fallthru
    _
  // Predicated region
  $region6: #{_lambda_.1} parent=0 // pred_check
    _
  $region7: #{_lambda_.1} parent=0 // pred_check_branch
    %13 = sbr.rel (0) target = $region9
  $region8: #{_lambda_.1} parent=0 // pred_region
    _
  $region9: #{_lambda_.1} parent=0 // pred_fallthru
    _
  // Predicated region
  $region10: #{_lambda_.1} parent=0 // pred_check
    _
  $region11: #{_lambda_.1} parent=0 // pred_check_branch
    %15 = sbr.rel (0) target = $region13
  $region12: #{_lambda_.1} parent=0 // pred_region
    _
  $region13: #{_lambda_.1} parent=0 // pred_fallthru
    _
  // Predicated region
  $region14: #{_lambda_.1} parent=0 // pred_check
    _
  $region15: #{_lambda_.1} parent=0 // pred_check_branch
    %17 = sbr.rel (0) target = $region17
  $region16: #{_lambda_.1} parent=0 // pred_region
    _
  $region17: #{_lambda_.1} parent=0 // pred_fallthru
    _
  // Predicated region
  $region18: #{_lambda_.1} parent=0 // pred_check
    _
  $region19: #{_lambda_.1} parent=0 // pred_check_branch
    %19 = sbr.rel (0) target = $region21
  $region20: #{_lambda_.1} parent=0 // pred_region
    _
  $region21: #{_lambda_.1} parent=0 // pred_fallthru
    _
  %s20 = scalar_lea.vmem %s0, 28
  %v21 = vld [vmem:[%s20] sm:$0xf]
  %vm22 = vcmask 1043456
  %v23 = vsel %vm22, %v21, -inf
  %v24 = vrot.slane %v23, 4
  %v25 = vmax.f32 %v23, %v24
  %v26 = vrot.slane %v25, 2
  %v27 = vmax.f32 %v25, %v26
  %v28 = vrot.slane %v27, 1
  %v29 = vmax.f32 %v27, %v28
  %v30 = vsub.f32 %v21, %v29
  %v31 = vmul.f32 %v30, 1.442695
  %v32 = vpow.pop %v31
  %s33 = scalar_lea.vmem %s1, 28
  %v34 = vld [vmem:[%s33] sm:$0xf]
  %vm35 = vcmask 31744
  %v37 = vsel %vm35, %v34, 0
  %v40 = vsel %vm22, %v32, 0
  %42 = vmatprep.subr.mxu0 0.0
  %43 = vmatpush1.msra.mxu0 %v40
  %44 = vmatprep.subr.mxu0 0.0
  %45 = vmatpush1.msra.mxu0 0.0
  %46 = vmatprep.subr.mxu0 0.0
  %47 = vmatpush1.msra.mxu0 0.0
  %48 = vmatprep.subr.mxu0 0.0
  %49 = vmatpush1.msra.mxu0 0.0
  %50 = vmatprep.subr.mxu0 0.0
  %51 = vmatpush1.msra.mxu0 0.0
  %52 = vmatprep.subr.mxu0 0.0
  %53 = vmatpush1.msra.mxu0 0.0
  %54 = vmatprep.subr.mxu0 0.0
  %55 = vmatpush1.msra.mxu0 0.0
  %56 = vmatprep.subr.mxu0 0.0
  %57 = vmatpush1.msra.mxu0 0.0
  %58 = vmatprep.subr.mxu0 0.0
  %59 = vmatpush1.msra.mxu0 0.0
  %60 = vmatprep.subr.mxu0 0.0
  %61 = vmatpush1.msra.mxu0 0.0
  %62 = vmatprep.subr.mxu0 0.0
  %63 = vmatpush1.msra.mxu0 0.0
  %64 = vmatprep.subr.mxu0 0.0
  %65 = vmatpush1.msra.mxu0 0.0
  %66 = vmatprep.subr.mxu0 0.0
  %67 = vmatpush1.msra.mxu0 0.0
  %68 = vmatprep.subr.mxu0 0.0
  %69 = vmatpush1.msra.mxu0 0.0
  %70 = vmatprep.subr.mxu0 0.0
  %71 = vmatpush1.msra.mxu0 0.0
  %72 = vmatprep.subr.mxu0 0.0
  %73 = vmatpush1.msra.mxu0 0.0
  %74 = vmatprep.subr.mxu0 0.0
  %75 = vmatpush1.msra.mxu0 0.0
  %76 = vmatprep.subr.mxu0 0.0
  %77 = vmatpush1.msra.mxu0 0.0
  %78 = vmatprep.subr.mxu0 0.0
  %79 = vmatpush1.msra.mxu0 0.0
  %80 = vmatprep.subr.mxu0 0.0
  %81 = vmatpush1.msra.mxu0 0.0
  %82 = vmatprep.subr.mxu0 0.0
  %83 = vmatpush1.msra.mxu0 0.0
  %84 = vmatprep.subr.mxu0 0.0
  %85 = vmatpush1.msra.mxu0 0.0
  %86 = vmatprep.subr.mxu0 0.0
  %87 = vmatpush1.msra.mxu0 0.0
  %88 = vmatprep.subr.mxu0 0.0
  %89 = vmatpush1.msra.mxu0 0.0
  %90 = vmatprep.subr.mxu0 0.0
  %91 = vmatpush1.msra.mxu0 0.0
  %92 = vmatprep.subr.mxu0 0.0
  %93 = vmatpush1.msra.mxu0 0.0
  %94 = vmatprep.subr.mxu0 0.0
  %95 = vmatpush1.msra.mxu0 0.0
  %96 = vmatprep.subr.mxu0 0.0
  %97 = vmatpush1.msra.mxu0 0.0
  %98 = vmatprep.subr.mxu0 0.0
  %99 = vmatpush1.msra.mxu0 0.0
  %100 = vmatprep.subr.mxu0 0.0
  %101 = vmatpush1.msra.mxu0 0.0
  %102 = vmatprep.subr.mxu0 0.0
  %103 = vmatpush1.msra.mxu0 0.0
  %104 = vmatprep.subr.mxu0 0.0
  %105 = vmatpush1.msra.mxu0 0.0
  %106 = vmatprep.mubr.f32.mxu0 0.0
  %107 = vmatmul.mubr.f32.gmra.mrb[0].mxu0 %v37
  %v108 = vpop.f32.mrb[0].mxu0
  %v109 = vadd.f32 0.0, %v108
  %v110 = vpop.f32.mrb[0].mxu0
  %111 = vdwg.mxu0
  %s112 = scalar_lea.vmem %s2, 28
  %v113 = vld [vmem:[%s112] sm:$0xf]
  %115 = vset.pattern.permute.xlu0 0
  %116 = vperm.xlu0 %115, %v113
  %v117 = vpop.permute.xlu0 %116
  %v119 = vadd.f32 %v117, %v29
  %v120 = vmax.f32 %v109, 1.1754944e-38
  %v121 = vlog2.pop %v120
  %v122 = vmul.f32 %v121, 0.6931472
  %v123 = vadd.f32 %v119, %v122
  %s124 = scalar_lea.vmem %s0, 12
  %v125 = vld [vmem:[%s124] sm:$0xf]
  %v126 = vadd.f32 %v125, %v123
  %s127 = scalar_lea.vmem %s5, 12
  %128 = vst [vmem:[%s127] sm:$0xf] %v126
  %v129 = vld [vmem:[%s127] sm:$0xf]
  %v130 = vsel %vm22, %v129, -inf
  %v131 = vrot.slane %v130, 4
  %v132 = vmax.f32 %v130, %v131
  %v133 = vrot.slane %v132, 2
  %v134 = vmax.f32 %v132, %v133
  %v135 = vrot.slane %v134, 1
  %v136 = vmax.f32 %v134, %v135
  %v137 = vsub.f32 %v129, %v136
  %v138 = vmul.f32 %v137, 1.442695
  %v139 = vpow.pop %v138
  %s140 = scalar_lea.vmem %s1, 12
  %v141 = vld [vmem:[%s140] sm:$0xf]
  %v143 = vsel %vm35, %v141, 0
  %v146 = vsel %vm22, %v139, 0
  %148 = vmatprep.subr.mxu0 0.0
  %149 = vmatpush1.msra.mxu0 %v146
  %150 = vmatprep.subr.mxu0 0.0
  %151 = vmatpush1.msra.mxu0 0.0
  %152 = vmatprep.subr.mxu0 0.0
  %153 = vmatpush1.msra.mxu0 0.0
  %154 = vmatprep.subr.mxu0 0.0
  %155 = vmatpush1.msra.mxu0 0.0
  %156 = vmatprep.subr.mxu0 0.0
  %157 = vmatpush1.msra.mxu0 0.0
  %158 = vmatprep.subr.mxu0 0.0
  %159 = vmatpush1.msra.mxu0 0.0
  %160 = vmatprep.subr.mxu0 0.0
  %161 = vmatpush1.msra.mxu0 0.0
  %162 = vmatprep.subr.mxu0 0.0
  %163 = vmatpush1.msra.mxu0 0.0
  %164 = vmatprep.subr.mxu0 0.0
  %165 = vmatpush1.msra.mxu0 0.0
  %166 = vmatprep.subr.mxu0 0.0
  %167 = vmatpush1.msra.mxu0 0.0
  %168 = vmatprep.subr.mxu0 0.0
  %169 = vmatpush1.msra.mxu0 0.0
  %170 = vmatprep.subr.mxu0 0.0
  %171 = vmatpush1.msra.mxu0 0.0
  %172 = vmatprep.subr.mxu0 0.0
  %173 = vmatpush1.msra.mxu0 0.0
  %174 = vmatprep.subr.mxu0 0.0
  %175 = vmatpush1.msra.mxu0 0.0
  %176 = vmatprep.subr.mxu0 0.0
  %177 = vmatpush1.msra.mxu0 0.0
  %178 = vmatprep.subr.mxu0 0.0
  %179 = vmatpush1.msra.mxu0 0.0
  %180 = vmatprep.subr.mxu0 0.0
  %181 = vmatpush1.msra.mxu0 0.0
  %182 = vmatprep.subr.mxu0 0.0
  %183 = vmatpush1.msra.mxu0 0.0
  %184 = vmatprep.subr.mxu0 0.0
  %185 = vmatpush1.msra.mxu0 0.0
  %186 = vmatprep.subr.mxu0 0.0
  %187 = vmatpush1.msra.mxu0 0.0
  %188 = vmatprep.subr.mxu0 0.0
  %189 = vmatpush1.msra.mxu0 0.0
  %190 = vmatprep.subr.mxu0 0.0
  %191 = vmatpush1.msra.mxu0 0.0
  %192 = vmatprep.subr.mxu0 0.0
  %193 = vmatpush1.msra.mxu0 0.0
  %194 = vmatprep.subr.mxu0 0.0
  %195 = vmatpush1.msra.mxu0 0.0
  %196 = vmatprep.subr.mxu0 0.0
  %197 = vmatpush1.msra.mxu0 0.0
  %198 = vmatprep.subr.mxu0 0.0
  %199 = vmatpush1.msra.mxu0 0.0
  %200 = vmatprep.subr.mxu0 0.0
  %201 = vmatpush1.msra.mxu0 0.0
  %202 = vmatprep.subr.mxu0 0.0
  %203 = vmatpush1.msra.mxu0 0.0
  %204 = vmatprep.subr.mxu0 0.0
  %205 = vmatpush1.msra.mxu0 0.0
  %206 = vmatprep.subr.mxu0 0.0
  %207 = vmatpush1.msra.mxu0 0.0
  %208 = vmatprep.subr.mxu0 0.0
  %209 = vmatpush1.msra.mxu0 0.0
  %210 = vmatprep.subr.mxu0 0.0
  %211 = vmatpush1.msra.mxu0 0.0
  %212 = vmatprep.mubr.f32.mxu0 0.0
  %213 = vmatmul.mubr.f32.gmra.mrb[0].mxu0 %v143
  %v214 = vpop.f32.mrb[0].mxu0
  %v215 = vadd.f32 0.0, %v214
  %v216 = vpop.f32.mrb[0].mxu0
  %217 = vdwg.mxu0
  %s218 = scalar_lea.vmem %s2, 12
  %v219 = vld [vmem:[%s218] sm:$0xf]
  %221 = vset.pattern.permute.xlu0 0
  %222 = vperm.xlu0 %221, %v219
  %v223 = vpop.permute.xlu0 %222
  %v225 = vadd.f32 %v223, %v136
  %v226 = vmax.f32 %v215, 1.1754944e-38
  %v227 = vlog2.pop %v226
  %v228 = vmul.f32 %v227, 0.6931472
  %v229 = vadd.f32 %v225, %v228
  %s230 = scalar_lea.vmem %s0, 16
  %v231 = vld [vmem:[%s230] sm:$0xf]
  %v232 = vsel %vm22, %v231, -inf
  %v233 = vrot.slane %v232, 4
  %v234 = vmax.f32 %v232, %v233
  %v235 = vrot.slane %v234, 2
  %v236 = vmax.f32 %v234, %v235
  %v237 = vrot.slane %v236, 1
  %v238 = vmax.f32 %v236, %v237
  %v239 = vsub.f32 %v231, %v238
  %v240 = vmul.f32 %v239, 1.442695
  %v241 = vpow.pop %v240
  %s242 = scalar_lea.vmem %s1, 16
  %v243 = vld [vmem:[%s242] sm:$0xf]
  %v245 = vsel %vm35, %v243, 0
  %v248 = vsel %vm22, %v241, 0
  %250 = vmatprep.subr.mxu0 0.0
  %251 = vmatpush1.msra.mxu0 %v248
  %252 = vmatprep.subr.mxu0 0.0
  %253 = vmatpush1.msra.mxu0 0.0
  %254 = vmatprep.subr.mxu0 0.0
  %255 = vmatpush1.msra.mxu0 0.0
  %256 = vmatprep.subr.mxu0 0.0
  %257 = vmatpush1.msra.mxu0 0.0
  %258 = vmatprep.subr.mxu0 0.0
  %259 = vmatpush1.msra.mxu0 0.0
  %260 = vmatprep.subr.mxu0 0.0
  %261 = vmatpush1.msra.mxu0 0.0
  %262 = vmatprep.subr.mxu0 0.0
  %263 = vmatpush1.msra.mxu0 0.0
  %264 = vmatprep.subr.mxu0 0.0
  %265 = vmatpush1.msra.mxu0 0.0
  %266 = vmatprep.subr.mxu0 0.0
  %267 = vmatpush1.msra.mxu0 0.0
  %268 = vmatprep.subr.mxu0 0.0
  %269 = vmatpush1.msra.mxu0 0.0
  %270 = vmatprep.subr.mxu0 0.0
  %271 = vmatpush1.msra.mxu0 0.0
  %272 = vmatprep.subr.mxu0 0.0
  %273 = vmatpush1.msra.mxu0 0.0
  %274 = vmatprep.subr.mxu0 0.0
  %275 = vmatpush1.msra.mxu0 0.0
  %276 = vmatprep.subr.mxu0 0.0
  %277 = vmatpush1.msra.mxu0 0.0
  %278 = vmatprep.subr.mxu0 0.0
  %279 = vmatpush1.msra.mxu0 0.0
  %280 = vmatprep.subr.mxu0 0.0
  %281 = vmatpush1.msra.mxu0 0.0
  %282 = vmatprep.subr.mxu0 0.0
  %283 = vmatpush1.msra.mxu0 0.0
  %284 = vmatprep.subr.mxu0 0.0
  %285 = vmatpush1.msra.mxu0 0.0
  %286 = vmatprep.subr.mxu0 0.0
  %287 = vmatpush1.msra.mxu0 0.0
  %288 = vmatprep.subr.mxu0 0.0
  %289 = vmatpush1.msra.mxu0 0.0
  %290 = vmatprep.subr.mxu0 0.0
  %291 = vmatpush1.msra.mxu0 0.0
  %292 = vmatprep.subr.mxu0 0.0
  %293 = vmatpush1.msra.mxu0 0.0
  %294 = vmatprep.subr.mxu0 0.0
  %295 = vmatpush1.msra.mxu0 0.0
  %296 = vmatprep.subr.mxu0 0.0
  %297 = vmatpush1.msra.mxu0 0.0
  %298 = vmatprep.subr.mxu0 0.0
  %299 = vmatpush1.msra.mxu0 0.0
  %300 = vmatprep.subr.mxu0 0.0
  %301 = vmatpush1.msra.mxu0 0.0
  %302 = vmatprep.subr.mxu0 0.0
  %303 = vmatpush1.msra.mxu0 0.0
  %304 = vmatprep.subr.mxu0 0.0
  %305 = vmatpush1.msra.mxu0 0.0
  %306 = vmatprep.subr.mxu0 0.0
  %307 = vmatpush1.msra.mxu0 0.0
  %308 = vmatprep.subr.mxu0 0.0
  %309 = vmatpush1.msra.mxu0 0.0
  %310 = vmatprep.subr.mxu0 0.0
  %311 = vmatpush1.msra.mxu0 0.0
  %312 = vmatprep.subr.mxu0 0.0
  %313 = vmatpush1.msra.mxu0 0.0
  %314 = vmatprep.mubr.f32.mxu0 0.0
  %315 = vmatmul.mubr.f32.gmra.mrb[0].mxu0 %v245
  %v316 = vpop.f32.mrb[0].mxu0
  %v317 = vadd.f32 0.0, %v316
  %v318 = vpop.f32.mrb[0].mxu0
  %319 = vdwg.mxu0
  %s320 = scalar_lea.vmem %s2, 16
  %v321 = vld [vmem:[%s320] sm:$0xf]
  %323 = vset.pattern.permute.xlu0 0
  %324 = vperm.xlu0 %323, %v321
  %v325 = vpop.permute.xlu0 %324
  %v327 = vadd.f32 %v325, %v238
  %v328 = vmax.f32 %v317, 1.1754944e-38
  %v329 = vlog2.pop %v328
  %v330 = vmul.f32 %v329, 0.6931472
  %v331 = vadd.f32 %v327, %v330
  %v332 = vadd.f32 %v229, %v331
  %s333 = scalar_lea.vmem %s0, 4
  %v334 = vld [vmem:[%s333] sm:$0xf]
  %v335 = vadd.f32 %v334, %v332
  %s336 = scalar_lea.vmem %s5, 4
  %337 = vst [vmem:[%s336] sm:$0xf] %v335
  %s338 = scalar_lea.vmem %s0, 20
  %v339 = vld [vmem:[%s338] sm:$0xf]
  %v340 = vsel %vm22, %v339, -inf
  %v341 = vrot.slane %v340, 4
  %v342 = vmax.f32 %v340, %v341
  %v343 = vrot.slane %v342, 2
  %v344 = vmax.f32 %v342, %v343
  %v345 = vrot.slane %v344, 1
  %v346 = vmax.f32 %v344, %v345
  %v347 = vsub.f32 %v339, %v346
  %v348 = vmul.f32 %v347, 1.442695
  %v349 = vpow.pop %v348
  %s350 = scalar_lea.vmem %s1, 20
  %v351 = vld [vmem:[%s350] sm:$0xf]
  %v353 = vsel %vm35, %v351, 0
  %v356 = vsel %vm22, %v349, 0
  %358 = vmatprep.subr.mxu0 0.0
  %359 = vmatpush1.msra.mxu0 %v356
  %360 = vmatprep.subr.mxu0 0.0
  %361 = vmatpush1.msra.mxu0 0.0
  %362 = vmatprep.subr.mxu0 0.0
  %363 = vmatpush1.msra.mxu0 0.0
  %364 = vmatprep.subr.mxu0 0.0
  %365 = vmatpush1.msra.mxu0 0.0
  %366 = vmatprep.subr.mxu0 0.0
  %367 = vmatpush1.msra.mxu0 0.0
  %368 = vmatprep.subr.mxu0 0.0
  %369 = vmatpush1.msra.mxu0 0.0
  %370 = vmatprep.subr.mxu0 0.0
  %371 = vmatpush1.msra.mxu0 0.0
  %372 = vmatprep.subr.mxu0 0.0
  %373 = vmatpush1.msra.mxu0 0.0
  %374 = vmatprep.subr.mxu0 0.0
  %375 = vmatpush1.msra.mxu0 0.0
  %376 = vmatprep.subr.mxu0 0.0
  %377 = vmatpush1.msra.mxu0 0.0
  %378 = vmatprep.subr.mxu0 0.0
  %379 = vmatpush1.msra.mxu0 0.0
  %380 = vmatprep.subr.mxu0 0.0
  %381 = vmatpush1.msra.mxu0 0.0
  %382 = vmatprep.subr.mxu0 0.0
  %383 = vmatpush1.msra.mxu0 0.0
  %384 = vmatprep.subr.mxu0 0.0
  %385 = vmatpush1.msra.mxu0 0.0
  %386 = vmatprep.subr.mxu0 0.0
  %387 = vmatpush1.msra.mxu0 0.0
  %388 = vmatprep.subr.mxu0 0.0
  %389 = vmatpush1.msra.mxu0 0.0
  %390 = vmatprep.subr.mxu0 0.0
  %391 = vmatpush1.msra.mxu0 0.0
  %392 = vmatprep.subr.mxu0 0.0
  %393 = vmatpush1.msra.mxu0 0.0
  %394 = vmatprep.subr.mxu0 0.0
  %395 = vmatpush1.msra.mxu0 0.0
  %396 = vmatprep.subr.mxu0 0.0
  %397 = vmatpush1.msra.mxu0 0.0
  %398 = vmatprep.subr.mxu0 0.0
  %399 = vmatpush1.msra.mxu0 0.0
  %400 = vmatprep.subr.mxu0 0.0
  %401 = vmatpush1.msra.mxu0 0.0
  %402 = vmatprep.subr.mxu0 0.0
  %403 = vmatpush1.msra.mxu0 0.0
  %404 = vmatprep.subr.mxu0 0.0
  %405 = vmatpush1.msra.mxu0 0.0
  %406 = vmatprep.subr.mxu0 0.0
  %407 = vmatpush1.msra.mxu0 0.0
  %408 = vmatprep.subr.mxu0 0.0
  %409 = vmatpush1.msra.mxu0 0.0
  %410 = vmatprep.subr.mxu0 0.0
  %411 = vmatpush1.msra.mxu0 0.0
  %412 = vmatprep.subr.mxu0 0.0
  %413 = vmatpush1.msra.mxu0 0.0
  %414 = vmatprep.subr.mxu0 0.0
  %415 = vmatpush1.msra.mxu0 0.0
  %416 = vmatprep.subr.mxu0 0.0
  %417 = vmatpush1.msra.mxu0 0.0
  %418 = vmatprep.subr.mxu0 0.0
  %419 = vmatpush1.msra.mxu0 0.0
  %420 = vmatprep.subr.mxu0 0.0
  %421 = vmatpush1.msra.mxu0 0.0
  %422 = vmatprep.mubr.f32.mxu0 0.0
  %423 = vmatmul.mubr.f32.gmra.mrb[0].mxu0 %v353
  %v424 = vpop.f32.mrb[0].mxu0
  %v425 = vadd.f32 0.0, %v424
  %v426 = vpop.f32.mrb[0].mxu0
  %427 = vdwg.mxu0
  %s428 = scalar_lea.vmem %s2, 20
  %v429 = vld [vmem:[%s428] sm:$0xf]
  %431 = vset.pattern.permute.xlu0 0
  %432 = vperm.xlu0 %431, %v429
  %v433 = vpop.permute.xlu0 %432
  %v435 = vadd.f32 %v433, %v346
  %v436 = vmax.f32 %v425, 1.1754944e-38
  %v437 = vlog2.pop %v436
  %v438 = vmul.f32 %v437, 0.6931472
  %v439 = vadd.f32 %v435, %v438
  %s440 = scalar_lea.vmem %s0, 24
  %v441 = vld [vmem:[%s440] sm:$0xf]
  %v442 = vsel %vm22, %v441, -inf
  %v443 = vrot.slane %v442, 4
  %v444 = vmax.f32 %v442, %v443
  %v445 = vrot.slane %v444, 2
  %v446 = vmax.f32 %v444, %v445
  %v447 = vrot.slane %v446, 1
  %v448 = vmax.f32 %v446, %v447
  %v449 = vsub.f32 %v441, %v448
  %v450 = vmul.f32 %v449, 1.442695
  %v451 = vpow.pop %v450
  %s452 = scalar_lea.vmem %s1, 24
  %v453 = vld [vmem:[%s452] sm:$0xf]
  %v455 = vsel %vm35, %v453, 0
  %v458 = vsel %vm22, %v451, 0
  %460 = vmatprep.subr.mxu0 0.0
  %461 = vmatpush1.msra.mxu0 %v458
  %462 = vmatprep.subr.mxu0 0.0
  %463 = vmatpush1.msra.mxu0 0.0
  %464 = vmatprep.subr.mxu0 0.0
  %465 = vmatpush1.msra.mxu0 0.0
  %466 = vmatprep.subr.mxu0 0.0
  %467 = vmatpush1.msra.mxu0 0.0
  %468 = vmatprep.subr.mxu0 0.0
  %469 = vmatpush1.msra.mxu0 0.0
  %470 = vmatprep.subr.mxu0 0.0
  %471 = vmatpush1.msra.mxu0 0.0
  %472 = vmatprep.subr.mxu0 0.0
  %473 = vmatpush1.msra.mxu0 0.0
  %474 = vmatprep.subr.mxu0 0.0
  %475 = vmatpush1.msra.mxu0 0.0
  %476 = vmatprep.subr.mxu0 0.0
  %477 = vmatpush1.msra.mxu0 0.0
  %478 = vmatprep.subr.mxu0 0.0
  %479 = vmatpush1.msra.mxu0 0.0
  %480 = vmatprep.subr.mxu0 0.0
  %481 = vmatpush1.msra.mxu0 0.0
  %482 = vmatprep.subr.mxu0 0.0
  %483 = vmatpush1.msra.mxu0 0.0
  %484 = vmatprep.subr.mxu0 0.0
  %485 = vmatpush1.msra.mxu0 0.0
  %486 = vmatprep.subr.mxu0 0.0
  %487 = vmatpush1.msra.mxu0 0.0
  %488 = vmatprep.subr.mxu0 0.0
  %489 = vmatpush1.msra.mxu0 0.0
  %490 = vmatprep.subr.mxu0 0.0
  %491 = vmatpush1.msra.mxu0 0.0
  %492 = vmatprep.subr.mxu0 0.0
  %493 = vmatpush1.msra.mxu0 0.0
  %494 = vmatprep.subr.mxu0 0.0
  %495 = vmatpush1.msra.mxu0 0.0
  %496 = vmatprep.subr.mxu0 0.0
  %497 = vmatpush1.msra.mxu0 0.0
  %498 = vmatprep.subr.mxu0 0.0
  %499 = vmatpush1.msra.mxu0 0.0
  %500 = vmatprep.subr.mxu0 0.0
  %501 = vmatpush1.msra.mxu0 0.0
  %502 = vmatprep.subr.mxu0 0.0
  %503 = vmatpush1.msra.mxu0 0.0
  %504 = vmatprep.subr.mxu0 0.0
  %505 = vmatpush1.msra.mxu0 0.0
  %506 = vmatprep.subr.mxu0 0.0
  %507 = vmatpush1.msra.mxu0 0.0
  %508 = vmatprep.subr.mxu0 0.0
  %509 = vmatpush1.msra.mxu0 0.0
  %510 = vmatprep.subr.mxu0 0.0
  %511 = vmatpush1.msra.mxu0 0.0
  %512 = vmatprep.subr.mxu0 0.0
  %513 = vmatpush1.msra.mxu0 0.0
  %514 = vmatprep.subr.mxu0 0.0
  %515 = vmatpush1.msra.mxu0 0.0
  %516 = vmatprep.subr.mxu0 0.0
  %517 = vmatpush1.msra.mxu0 0.0
  %518 = vmatprep.subr.mxu0 0.0
  %519 = vmatpush1.msra.mxu0 0.0
  %520 = vmatprep.subr.mxu0 0.0
  %521 = vmatpush1.msra.mxu0 0.0
  %522 = vmatprep.subr.mxu0 0.0
  %523 = vmatpush1.msra.mxu0 0.0
  %524 = vmatprep.mubr.f32.mxu0 0.0
  %525 = vmatmul.mubr.f32.gmra.mrb[0].mxu0 %v455
  %v526 = vpop.f32.mrb[0].mxu0
  %v527 = vadd.f32 0.0, %v526
  %v528 = vpop.f32.mrb[0].mxu0
  %529 = vdwg.mxu0
  %s530 = scalar_lea.vmem %s2, 24
  %v531 = vld [vmem:[%s530] sm:$0xf]
  %533 = vset.pattern.permute.xlu0 0
  %534 = vperm.xlu0 %533, %v531
  %v535 = vpop.permute.xlu0 %534
  %v537 = vadd.f32 %v535, %v448
  %v538 = vmax.f32 %v527, 1.1754944e-38
  %v539 = vlog2.pop %v538
  %v540 = vmul.f32 %v539, 0.6931472
  %v541 = vadd.f32 %v537, %v540
  %v542 = vadd.f32 %v439, %v541
  %s543 = scalar_lea.vmem %s0, 8
  %v544 = vld [vmem:[%s543] sm:$0xf]
  %v545 = vadd.f32 %v544, %v542
  %s546 = scalar_lea.vmem %s5, 8
  %547 = vst [vmem:[%s546] sm:$0xf] %v545
  %v548 = vld [vmem:[%s336] sm:$0xf]
  %v549 = vsel %vm22, %v548, -inf
  %v550 = vrot.slane %v549, 4
  %v551 = vmax.f32 %v549, %v550
  %v552 = vrot.slane %v551, 2
  %v553 = vmax.f32 %v551, %v552
  %v554 = vrot.slane %v553, 1
  %v555 = vmax.f32 %v553, %v554
  %v556 = vsub.f32 %v548, %v555
  %v557 = vmul.f32 %v556, 1.442695
  %v558 = vpow.pop %v557
  %s559 = scalar_lea.vmem %s1, 4
  %v560 = vld [vmem:[%s559] sm:$0xf]
  %v562 = vsel %vm35, %v560, 0
  %v565 = vsel %vm22, %v558, 0
  %567 = vmatprep.subr.mxu0 0.0
  %568 = vmatpush1.msra.mxu0 %v565
  %569 = vmatprep.subr.mxu0 0.0
  %570 = vmatpush1.msra.mxu0 0.0
  %571 = vmatprep.subr.mxu0 0.0
  %572 = vmatpush1.msra.mxu0 0.0
  %573 = vmatprep.subr.mxu0 0.0
  %574 = vmatpush1.msra.mxu0 0.0
  %575 = vmatprep.subr.mxu0 0.0
  %576 = vmatpush1.msra.mxu0 0.0
  %577 = vmatprep.subr.mxu0 0.0
  %578 = vmatpush1.msra.mxu0 0.0
  %579 = vmatprep.subr.mxu0 0.0
  %580 = vmatpush1.msra.mxu0 0.0
  %581 = vmatprep.subr.mxu0 0.0
  %582 = vmatpush1.msra.mxu0 0.0
  %583 = vmatprep.subr.mxu0 0.0
  %584 = vmatpush1.msra.mxu0 0.0
  %585 = vmatprep.subr.mxu0 0.0
  %586 = vmatpush1.msra.mxu0 0.0
  %587 = vmatprep.subr.mxu0 0.0
  %588 = vmatpush1.msra.mxu0 0.0
  %589 = vmatprep.subr.mxu0 0.0
  %590 = vmatpush1.msra.mxu0 0.0
  %591 = vmatprep.subr.mxu0 0.0
  %592 = vmatpush1.msra.mxu0 0.0
  %593 = vmatprep.subr.mxu0 0.0
  %594 = vmatpush1.msra.mxu0 0.0
  %595 = vmatprep.subr.mxu0 0.0
  %596 = vmatpush1.msra.mxu0 0.0
  %597 = vmatprep.subr.mxu0 0.0
  %598 = vmatpush1.msra.mxu0 0.0
  %599 = vmatprep.subr.mxu0 0.0
  %600 = vmatpush1.msra.mxu0 0.0
  %601 = vmatprep.subr.mxu0 0.0
  %602 = vmatpush1.msra.mxu0 0.0
  %603 = vmatprep.subr.mxu0 0.0
  %604 = vmatpush1.msra.mxu0 0.0
  %605 = vmatprep.subr.mxu0 0.0
  %606 = vmatpush1.msra.mxu0 0.0
  %607 = vmatprep.subr.mxu0 0.0
  %608 = vmatpush1.msra.mxu0 0.0
  %609 = vmatprep.subr.mxu0 0.0
  %610 = vmatpush1.msra.mxu0 0.0
  %611 = vmatprep.subr.mxu0 0.0
  %612 = vmatpush1.msra.mxu0 0.0
  %613 = vmatprep.subr.mxu0 0.0
  %614 = vmatpush1.msra.mxu0 0.0
  %615 = vmatprep.subr.mxu0 0.0
  %616 = vmatpush1.msra.mxu0 0.0
  %617 = vmatprep.subr.mxu0 0.0
  %618 = vmatpush1.msra.mxu0 0.0
  %619 = vmatprep.subr.mxu0 0.0
  %620 = vmatpush1.msra.mxu0 0.0
  %621 = vmatprep.subr.mxu0 0.0
  %622 = vmatpush1.msra.mxu0 0.0
  %623 = vmatprep.subr.mxu0 0.0
  %624 = vmatpush1.msra.mxu0 0.0
  %625 = vmatprep.subr.mxu0 0.0
  %626 = vmatpush1.msra.mxu0 0.0
  %627 = vmatprep.subr.mxu0 0.0
  %628 = vmatpush1.msra.mxu0 0.0
  %629 = vmatprep.subr.mxu0 0.0
  %630 = vmatpush1.msra.mxu0 0.0
  %631 = vmatprep.mubr.f32.mxu0 0.0
  %632 = vmatmul.mubr.f32.gmra.mrb[0].mxu0 %v562
  %v633 = vpop.f32.mrb[0].mxu0
  %v634 = vadd.f32 0.0, %v633
  %v635 = vpop.f32.mrb[0].mxu0
  %636 = vdwg.mxu0
  %s637 = scalar_lea.vmem %s2, 4
  %v638 = vld [vmem:[%s637] sm:$0xf]
  %640 = vset.pattern.permute.xlu0 0
  %641 = vperm.xlu0 %640, %v638
  %v642 = vpop.permute.xlu0 %641
  %v644 = vadd.f32 %v642, %v555
  %v645 = vmax.f32 %v634, 1.1754944e-38
  %v646 = vlog2.pop %v645
  %v647 = vmul.f32 %v646, 0.6931472
  %v648 = vadd.f32 %v644, %v647
  %v649 = vld [vmem:[%s546] sm:$0xf]
  %v650 = vsel %vm22, %v649, -inf
  %v651 = vrot.slane %v650, 4
  %v652 = vmax.f32 %v650, %v651
  %v653 = vrot.slane %v652, 2
  %v654 = vmax.f32 %v652, %v653
  %v655 = vrot.slane %v654, 1
  %v656 = vmax.f32 %v654, %v655
  %v657 = vsub.f32 %v649, %v656
  %v658 = vmul.f32 %v657, 1.442695
  %v659 = vpow.pop %v658
  %s660 = scalar_lea.vmem %s1, 8
  %v661 = vld [vmem:[%s660] sm:$0xf]
  %v663 = vsel %vm35, %v661, 0
  %v666 = vsel %vm22, %v659, 0
  %668 = vmatprep.subr.mxu0 0.0
  %669 = vmatpush1.msra.mxu0 %v666
  %670 = vmatprep.subr.mxu0 0.0
  %671 = vmatpush1.msra.mxu0 0.0
  %672 = vmatprep.subr.mxu0 0.0
  %673 = vmatpush1.msra.mxu0 0.0
  %674 = vmatprep.subr.mxu0 0.0
  %675 = vmatpush1.msra.mxu0 0.0
  %676 = vmatprep.subr.mxu0 0.0
  %677 = vmatpush1.msra.mxu0 0.0
  %678 = vmatprep.subr.mxu0 0.0
  %679 = vmatpush1.msra.mxu0 0.0
  %680 = vmatprep.subr.mxu0 0.0
  %681 = vmatpush1.msra.mxu0 0.0
  %682 = vmatprep.subr.mxu0 0.0
  %683 = vmatpush1.msra.mxu0 0.0
  %684 = vmatprep.subr.mxu0 0.0
  %685 = vmatpush1.msra.mxu0 0.0
  %686 = vmatprep.subr.mxu0 0.0
  %687 = vmatpush1.msra.mxu0 0.0
  %688 = vmatprep.subr.mxu0 0.0
  %689 = vmatpush1.msra.mxu0 0.0
  %690 = vmatprep.subr.mxu0 0.0
  %691 = vmatpush1.msra.mxu0 0.0
  %692 = vmatprep.subr.mxu0 0.0
  %693 = vmatpush1.msra.mxu0 0.0
  %694 = vmatprep.subr.mxu0 0.0
  %695 = vmatpush1.msra.mxu0 0.0
  %696 = vmatprep.subr.mxu0 0.0
  %697 = vmatpush1.msra.mxu0 0.0
  %698 = vmatprep.subr.mxu0 0.0
  %699 = vmatpush1.msra.mxu0 0.0
  %700 = vmatprep.subr.mxu0 0.0
  %701 = vmatpush1.msra.mxu0 0.0
  %702 = vmatprep.subr.mxu0 0.0
  %703 = vmatpush1.msra.mxu0 0.0
  %704 = vmatprep.subr.mxu0 0.0
  %705 = vmatpush1.msra.mxu0 0.0
  %706 = vmatprep.subr.mxu0 0.0
  %707 = vmatpush1.msra.mxu0 0.0
  %708 = vmatprep.subr.mxu0 0.0
  %709 = vmatpush1.msra.mxu0 0.0
  %710 = vmatprep.subr.mxu0 0.0
  %711 = vmatpush1.msra.mxu0 0.0
  %712 = vmatprep.subr.mxu0 0.0
  %713 = vmatpush1.msra.mxu0 0.0
  %714 = vmatprep.subr.mxu0 0.0
  %715 = vmatpush1.msra.mxu0 0.0
  %716 = vmatprep.subr.mxu0 0.0
  %717 = vmatpush1.msra.mxu0 0.0
  %718 = vmatprep.subr.mxu0 0.0
  %719 = vmatpush1.msra.mxu0 0.0
  %720 = vmatprep.subr.mxu0 0.0
  %721 = vmatpush1.msra.mxu0 0.0
  %722 = vmatprep.subr.mxu0 0.0
  %723 = vmatpush1.msra.mxu0 0.0
  %724 = vmatprep.subr.mxu0 0.0
  %725 = vmatpush1.msra.mxu0 0.0
  %726 = vmatprep.subr.mxu0 0.0
  %727 = vmatpush1.msra.mxu0 0.0
  %728 = vmatprep.subr.mxu0 0.0
  %729 = vmatpush1.msra.mxu0 0.0
  %730 = vmatprep.subr.mxu0 0.0
  %731 = vmatpush1.msra.mxu0 0.0
  %732 = vmatprep.mubr.f32.mxu0 0.0
  %733 = vmatmul.mubr.f32.gmra.mrb[0].mxu0 %v663
  %v734 = vpop.f32.mrb[0].mxu0
  %v735 = vadd.f32 0.0, %v734
  %v736 = vpop.f32.mrb[0].mxu0
  %737 = vdwg.mxu0
  %s738 = scalar_lea.vmem %s2, 8
  %v739 = vld [vmem:[%s738] sm:$0xf]
  %741 = vset.pattern.permute.xlu0 0
  %742 = vperm.xlu0 %741, %v739
  %v743 = vpop.permute.xlu0 %742
  %v745 = vadd.f32 %v743, %v656
  %v746 = vmax.f32 %v735, 1.1754944e-38
  %v747 = vlog2.pop %v746
  %v748 = vmul.f32 %v747, 0.6931472
  %v749 = vadd.f32 %v745, %v748
  %v750 = vadd.f32 %v648, %v749
  %v751 = vld [vmem:[%s0] sm:$0xf]
  %v752 = vadd.f32 %v751, %v750
  %753 = vst [vmem:[%s5] sm:$0xf] %v752
  %v754 = vld [vmem:[%s5] sm:$0xf]
  %v755 = vsel %vm22, %v754, -inf
  %v756 = vrot.slane %v755, 4
  %v757 = vmax.f32 %v755, %v756
  %v758 = vrot.slane %v757, 2
  %v759 = vmax.f32 %v757, %v758
  %v760 = vrot.slane %v759, 1
  %v761 = vmax.f32 %v759, %v760
  %v762 = vsub.f32 %v754, %v761
  %v763 = vmul.f32 %v762, 1.442695
  %v764 = vpow.pop %v763
  %v765 = vsel %vm22, %v764, 0.0
  %v766 = vrot.slane %v765, 4
  %v767 = vadd.f32 %v765, %v766
  %v768 = vrot.slane %v767, 2
  %v769 = vadd.f32 %v767, %v768
  %v770 = vrot.slane %v769, 1
  %v771 = vadd.f32 %v769, %v770
  %v772 = vlog2.pop %v771
  %v773 = vmul.f32 %v772, 0.6931472
  %v774 = vadd.f32 %v761, %v773
  %v775 = vsub.f32 %v754, %v774
  %776 = vst [vmem:[%s5] sm:$0xf] %v775
  %v777 = vld [vmem:[%s0] sm:$0xf]
  %v778 = vsel %vm22, %v777, -inf
  %v779 = vrot.slane %v778, 4
  %v780 = vmax.f32 %v778, %v779
  %v781 = vrot.slane %v780, 2
  %v782 = vmax.f32 %v780, %v781
  %v783 = vrot.slane %v782, 1
  %v784 = vmax.f32 %v782, %v783
  %v785 = vsub.f32 %v777, %v784
  %v786 = vmul.f32 %v785, 1.442695
  %v787 = vpow.pop %v786
  %v788 = vld [vmem:[%s3] sm:$0xff]
  %v790 = vsel %vm35, %v788, 0
  %v793 = vsel %vm22, %v787, 0
  %795 = vmatprep.subr.mxu0 0.0
  %796 = vmatpush1.msra.mxu0 %v793
  %797 = vmatprep.subr.mxu0 0.0
  %798 = vmatpush1.msra.mxu0 0.0
  %799 = vmatprep.subr.mxu0 0.0
  %800 = vmatpush1.msra.mxu0 0.0
  %801 = vmatprep.subr.mxu0 0.0
  %802 = vmatpush1.msra.mxu0 0.0
  %803 = vmatprep.subr.mxu0 0.0
  %804 = vmatpush1.msra.mxu0 0.0
  %805 = vmatprep.subr.mxu0 0.0
  %806 = vmatpush1.msra.mxu0 0.0
  %807 = vmatprep.subr.mxu0 0.0
  %808 = vmatpush1.msra.mxu0 0.0
  %809 = vmatprep.subr.mxu0 0.0
  %810 = vmatpush1.msra.mxu0 0.0
  %811 = vmatprep.subr.mxu0 0.0
  %812 = vmatpush1.msra.mxu0 0.0
  %813 = vmatprep.subr.mxu0 0.0
  %814 = vmatpush1.msra.mxu0 0.0
  %815 = vmatprep.subr.mxu0 0.0
  %816 = vmatpush1.msra.mxu0 0.0
  %817 = vmatprep.subr.mxu0 0.0
  %818 = vmatpush1.msra.mxu0 0.0
  %819 = vmatprep.subr.mxu0 0.0
  %820 = vmatpush1.msra.mxu0 0.0
  %821 = vmatprep.subr.mxu0 0.0
  %822 = vmatpush1.msra.mxu0 0.0
  %823 = vmatprep.subr.mxu0 0.0
  %824 = vmatpush1.msra.mxu0 0.0
  %825 = vmatprep.subr.mxu0 0.0
  %826 = vmatpush1.msra.mxu0 0.0
  %827 = vmatprep.subr.mxu0 0.0
  %828 = vmatpush1.msra.mxu0 0.0
  %829 = vmatprep.subr.mxu0 0.0
  %830 = vmatpush1.msra.mxu0 0.0
  %831 = vmatprep.subr.mxu0 0.0
  %832 = vmatpush1.msra.mxu0 0.0
  %833 = vmatprep.subr.mxu0 0.0
  %834 = vmatpush1.msra.mxu0 0.0
  %835 = vmatprep.subr.mxu0 0.0
  %836 = vmatpush1.msra.mxu0 0.0
  %837 = vmatprep.subr.mxu0 0.0
  %838 = vmatpush1.msra.mxu0 0.0
  %839 = vmatprep.subr.mxu0 0.0
  %840 = vmatpush1.msra.mxu0 0.0
  %841 = vmatprep.subr.mxu0 0.0
  %842 = vmatpush1.msra.mxu0 0.0
  %843 = vmatprep.subr.mxu0 0.0
  %844 = vmatpush1.msra.mxu0 0.0
  %845 = vmatprep.subr.mxu0 0.0
  %846 = vmatpush1.msra.mxu0 0.0
  %847 = vmatprep.subr.mxu0 0.0
  %848 = vmatpush1.msra.mxu0 0.0
  %849 = vmatprep.subr.mxu0 0.0
  %850 = vmatpush1.msra.mxu0 0.0
  %851 = vmatprep.subr.mxu0 0.0
  %852 = vmatpush1.msra.mxu0 0.0
  %853 = vmatprep.subr.mxu0 0.0
  %854 = vmatpush1.msra.mxu0 0.0
  %855 = vmatprep.subr.mxu0 0.0
  %856 = vmatpush1.msra.mxu0 0.0
  %857 = vmatprep.subr.mxu0 0.0
  %858 = vmatpush1.msra.mxu0 0.0
  %859 = vmatprep.mubr.f32.mxu0 0.0
  %860 = vmatmul.mubr.f32.gmra.mrb[0].mxu0 %v790
  %v861 = vpop.f32.mrb[0].mxu0
  %v862 = vadd.f32 0.0, %v861
  %v863 = vpop.f32.mrb[0].mxu0
  %864 = vdwg.mxu0
  %v865 = vld [vmem:[%s4] sm:$0xff]
  %867 = vset.pattern.permute.xlu0 0
  %868 = vperm.xlu0 %867, %v865
  %v869 = vpop.permute.xlu0 %868
  %v871 = vadd.f32 %v869, %v784
  %v872 = vmax.f32 %v862, 1.1754944e-38
  %v873 = vlog2.pop %v872
  %v874 = vmul.f32 %v873, 0.6931472
  %v875 = vadd.f32 %v871, %v874
  %v876 = vld [vmem:[%s336] sm:$0xf]
  %v877 = vadd.f32 %v876, %v875
  %v878 = vsel %vm22, %v877, -inf
  %v879 = vrot.slane %v878, 4
  %v880 = vmax.f32 %v878, %v879
  %v881 = vrot.slane %v880, 2
  %v882 = vmax.f32 %v880, %v881
  %v883 = vrot.slane %v882, 1
  %v884 = vmax.f32 %v882, %v883
  %v885 = vsub.f32 %v877, %v884
  %v886 = vmul.f32 %v885, 1.442695
  %v887 = vpow.pop %v886
  %v888 = vsel %vm22, %v887, 0.0
  %v889 = vrot.slane %v888, 4
  %v890 = vadd.f32 %v888, %v889
  %v891 = vrot.slane %v890, 2
  %v892 = vadd.f32 %v890, %v891
  %v893 = vrot.slane %v892, 1
  %v894 = vadd.f32 %v892, %v893
  %v895 = vlog2.pop %v894
  %v896 = vmul.f32 %v895, 0.6931472
  %v897 = vadd.f32 %v884, %v896
  %v898 = vsub.f32 %v877, %v897
  %899 = vst [vmem:[%s336] sm:$0xf] %v898
  %v900 = vld [vmem:[%s546] sm:$0xf]
  %v902 = vrot.slane %v875, 4
  %v904 = vadd.f32 %v900, %v902
  %v905 = vsel %vm22, %v904, -inf
  %v906 = vrot.slane %v905, 4
  %v907 = vmax.f32 %v905, %v906
  %v908 = vrot.slane %v907, 2
  %v909 = vmax.f32 %v907, %v908
  %v910 = vrot.slane %v909, 1
  %v911 = vmax.f32 %v909, %v910
  %v912 = vsub.f32 %v904, %v911
  %v913 = vmul.f32 %v912, 1.442695
  %v914 = vpow.pop %v913
  %v915 = vsel %vm22, %v914, 0.0
  %v916 = vrot.slane %v915, 4
  %v917 = vadd.f32 %v915, %v916
  %v918 = vrot.slane %v917, 2
  %v919 = vadd.f32 %v917, %v918
  %v920 = vrot.slane %v919, 1
  %v921 = vadd.f32 %v919, %v920
  %v922 = vlog2.pop %v921
  %v923 = vmul.f32 %v922, 0.6931472
  %v924 = vadd.f32 %v911, %v923
  %v925 = vsub.f32 %v904, %v924
  %926 = vst [vmem:[%s546] sm:$0xf] %v925
  %v927 = vld [vmem:[%s333] sm:$0xf]
  %v928 = vadd.f32 %v927, %v875
  %v929 = vsel %vm22, %v928, -inf
  %v930 = vrot.slane %v929, 4
  %v931 = vmax.f32 %v929, %v930
  %v932 = vrot.slane %v931, 2
  %v933 = vmax.f32 %v931, %v932
  %v934 = vrot.slane %v933, 1
  %v935 = vmax.f32 %v933, %v934
  %v936 = vsub.f32 %v928, %v935
  %v937 = vmul.f32 %v936, 1.442695
  %v938 = vpow.pop %v937
  %v939 = vld [vmem:[%s3 + $0x8] sm:$0xff]
  %v941 = vsel %vm35, %v939, 0
  %v944 = vsel %vm22, %v938, 0
  %946 = vmatprep.subr.mxu0 0.0
  %947 = vmatpush1.msra.mxu0 %v944
  %948 = vmatprep.subr.mxu0 0.0
  %949 = vmatpush1.msra.mxu0 0.0
  %950 = vmatprep.subr.mxu0 0.0
  %951 = vmatpush1.msra.mxu0 0.0
  %952 = vmatprep.subr.mxu0 0.0
  %953 = vmatpush1.msra.mxu0 0.0
  %954 = vmatprep.subr.mxu0 0.0
  %955 = vmatpush1.msra.mxu0 0.0
  %956 = vmatprep.subr.mxu0 0.0
  %957 = vmatpush1.msra.mxu0 0.0
  %958 = vmatprep.subr.mxu0 0.0
  %959 = vmatpush1.msra.mxu0 0.0
  %960 = vmatprep.subr.mxu0 0.0
  %961 = vmatpush1.msra.mxu0 0.0
  %962 = vmatprep.subr.mxu0 0.0
  %963 = vmatpush1.msra.mxu0 0.0
  %964 = vmatprep.subr.mxu0 0.0
  %965 = vmatpush1.msra.mxu0 0.0
  %966 = vmatprep.subr.mxu0 0.0
  %967 = vmatpush1.msra.mxu0 0.0
  %968 = vmatprep.subr.mxu0 0.0
  %969 = vmatpush1.msra.mxu0 0.0
  %970 = vmatprep.subr.mxu0 0.0
  %971 = vmatpush1.msra.mxu0 0.0
  %972 = vmatprep.subr.mxu0 0.0
  %973 = vmatpush1.msra.mxu0 0.0
  %974 = vmatprep.subr.mxu0 0.0
  %975 = vmatpush1.msra.mxu0 0.0
  %976 = vmatprep.subr.mxu0 0.0
  %977 = vmatpush1.msra.mxu0 0.0
  %978 = vmatprep.subr.mxu0 0.0
  %979 = vmatpush1.msra.mxu0 0.0
  %980 = vmatprep.subr.mxu0 0.0
  %981 = vmatpush1.msra.mxu0 0.0
  %982 = vmatprep.subr.mxu0 0.0
  %983 = vmatpush1.msra.mxu0 0.0
  %984 = vmatprep.subr.mxu0 0.0
  %985 = vmatpush1.msra.mxu0 0.0
  %986 = vmatprep.subr.mxu0 0.0
  %987 = vmatpush1.msra.mxu0 0.0
  %988 = vmatprep.subr.mxu0 0.0
  %989 = vmatpush1.msra.mxu0 0.0
  %990 = vmatprep.subr.mxu0 0.0
  %991 = vmatpush1.msra.mxu0 0.0
  %992 = vmatprep.subr.mxu0 0.0
  %993 = vmatpush1.msra.mxu0 0.0
  %994 = vmatprep.subr.mxu0 0.0
  %995 = vmatpush1.msra.mxu0 0.0
  %996 = vmatprep.subr.mxu0 0.0
  %997 = vmatpush1.msra.mxu0 0.0
  %998 = vmatprep.subr.mxu0 0.0
  %999 = vmatpush1.msra.mxu0 0.0
  %1000 = vmatprep.subr.mxu0 0.0
  %1001 = vmatpush1.msra.mxu0 0.0
  %1002 = vmatprep.subr.mxu0 0.0
  %1003 = vmatpush1.msra.mxu0 0.0
  %1004 = vmatprep.subr.mxu0 0.0
  %1005 = vmatpush1.msra.mxu0 0.0
  %1006 = vmatprep.subr.mxu0 0.0
  %1007 = vmatpush1.msra.mxu0 0.0
  %1008 = vmatprep.subr.mxu0 0.0
  %1009 = vmatpush1.msra.mxu0 0.0
  %1010 = vmatprep.mubr.f32.mxu0 0.0
  %1011 = vmatmul.mubr.f32.gmra.mrb[0].mxu0 %v941
  %v1012 = vpop.f32.mrb[0].mxu0
  %v1013 = vadd.f32 0.0, %v1012
  %v1014 = vpop.f32.mrb[0].mxu0
  %1015 = vdwg.mxu0
  %v1016 = vld [vmem:[%s4 + $0x8] sm:$0xff]
  %1018 = vset.pattern.permute.xlu0 0
  %1019 = vperm.xlu0 %1018, %v1016
  %v1020 = vpop.permute.xlu0 %1019
  %v1022 = vadd.f32 %v1020, %v935
  %v1023 = vmax.f32 %v1013, 1.1754944e-38
  %v1024 = vlog2.pop %v1023
  %v1025 = vmul.f32 %v1024, 0.6931472
  %v1026 = vadd.f32 %v1022, %v1025
  %v1027 = vld [vmem:[%s127] sm:$0xf]
  %v1028 = vadd.f32 %v1027, %v1026
  %v1029 = vsel %vm22, %v1028, -inf
  %v1030 = vrot.slane %v1029, 4
  %v1031 = vmax.f32 %v1029, %v1030
  %v1032 = vrot.slane %v1031, 2
  %v1033 = vmax.f32 %v1031, %v1032
  %v1034 = vrot.slane %v1033, 1
  %v1035 = vmax.f32 %v1033, %v1034
  %v1036 = vsub.f32 %v1028, %v1035
  %v1037 = vmul.f32 %v1036, 1.442695
  %v1038 = vpow.pop %v1037
  %v1039 = vsel %vm22, %v1038, 0.0
  %v1040 = vrot.slane %v1039, 4
  %v1041 = vadd.f32 %v1039, %v1040
  %v1042 = vrot.slane %v1041, 2
  %v1043 = vadd.f32 %v1041, %v1042
  %v1044 = vrot.slane %v1043, 1
  %v1045 = vadd.f32 %v1043, %v1044
  %v1046 = vlog2.pop %v1045
  %v1047 = vmul.f32 %v1046, 0.6931472
  %v1048 = vadd.f32 %v1035, %v1047
  %v1049 = vsub.f32 %v1028, %v1048
  %1050 = vst [vmem:[%s127] sm:$0xf] %v1049
  %v1051 = vld [vmem:[%s230] sm:$0xf]
  %v1053 = vrot.slane %v1026, 4
  %v1055 = vadd.f32 %v1051, %v1053
  %v1056 = vsel %vm22, %v1055, -inf
  %v1057 = vrot.slane %v1056, 4
  %v1058 = vmax.f32 %v1056, %v1057
  %v1059 = vrot.slane %v1058, 2
  %v1060 = vmax.f32 %v1058, %v1059
  %v1061 = vrot.slane %v1060, 1
  %v1062 = vmax.f32 %v1060, %v1061
  %v1063 = vsub.f32 %v1055, %v1062
  %v1064 = vmul.f32 %v1063, 1.442695
  %v1065 = vpow.pop %v1064
  %v1066 = vsel %vm22, %v1065, 0.0
  %v1067 = vrot.slane %v1066, 4
  %v1068 = vadd.f32 %v1066, %v1067
  %v1069 = vrot.slane %v1068, 2
  %v1070 = vadd.f32 %v1068, %v1069
  %v1071 = vrot.slane %v1070, 1
  %v1072 = vadd.f32 %v1070, %v1071
  %v1073 = vlog2.pop %v1072
  %v1074 = vmul.f32 %v1073, 0.6931472
  %v1075 = vadd.f32 %v1062, %v1074
  %v1076 = vsub.f32 %v1055, %v1075
  %s1077 = scalar_lea.vmem %s5, 16
  %1078 = vst [vmem:[%s1077] sm:$0xf] %v1076
  %v1079 = vld [vmem:[%s543] sm:$0xf]
  %v1080 = vadd.f32 %v1079, %v902
  %v1081 = vsel %vm22, %v1080, -inf
  %v1082 = vrot.slane %v1081, 4
  %v1083 = vmax.f32 %v1081, %v1082
  %v1084 = vrot.slane %v1083, 2
  %v1085 = vmax.f32 %v1083, %v1084
  %v1086 = vrot.slane %v1085, 1
  %v1087 = vmax.f32 %v1085, %v1086
  %v1088 = vsub.f32 %v1080, %v1087
  %v1089 = vmul.f32 %v1088, 1.442695
  %v1090 = vpow.pop %v1089
  %v1091 = vld [vmem:[%s3 + $0x10] sm:$0xff]
  %v1093 = vsel %vm35, %v1091, 0
  %v1096 = vsel %vm22, %v1090, 0
  %1098 = vmatprep.subr.mxu0 0.0
  %1099 = vmatpush1.msra.mxu0 %v1096
  %1100 = vmatprep.subr.mxu0 0.0
  %1101 = vmatpush1.msra.mxu0 0.0
  %1102 = vmatprep.subr.mxu0 0.0
  %1103 = vmatpush1.msra.mxu0 0.0
  %1104 = vmatprep.subr.mxu0 0.0
  %1105 = vmatpush1.msra.mxu0 0.0
  %1106 = vmatprep.subr.mxu0 0.0
  %1107 = vmatpush1.msra.mxu0 0.0
  %1108 = vmatprep.subr.mxu0 0.0
  %1109 = vmatpush1.msra.mxu0 0.0
  %1110 = vmatprep.subr.mxu0 0.0
  %1111 = vmatpush1.msra.mxu0 0.0
  %1112 = vmatprep.subr.mxu0 0.0
  %1113 = vmatpush1.msra.mxu0 0.0
  %1114 = vmatprep.subr.mxu0 0.0
  %1115 = vmatpush1.msra.mxu0 0.0
  %1116 = vmatprep.subr.mxu0 0.0
  %1117 = vmatpush1.msra.mxu0 0.0
  %1118 = vmatprep.subr.mxu0 0.0
  %1119 = vmatpush1.msra.mxu0 0.0
  %1120 = vmatprep.subr.mxu0 0.0
  %1121 = vmatpush1.msra.mxu0 0.0
  %1122 = vmatprep.subr.mxu0 0.0
  %1123 = vmatpush1.msra.mxu0 0.0
  %1124 = vmatprep.subr.mxu0 0.0
  %1125 = vmatpush1.msra.mxu0 0.0
  %1126 = vmatprep.subr.mxu0 0.0
  %1127 = vmatpush1.msra.mxu0 0.0
  %1128 = vmatprep.subr.mxu0 0.0
  %1129 = vmatpush1.msra.mxu0 0.0
  %1130 = vmatprep.subr.mxu0 0.0
  %1131 = vmatpush1.msra.mxu0 0.0
  %1132 = vmatprep.subr.mxu0 0.0
  %1133 = vmatpush1.msra.mxu0 0.0
  %1134 = vmatprep.subr.mxu0 0.0
  %1135 = vmatpush1.msra.mxu0 0.0
  %1136 = vmatprep.subr.mxu0 0.0
  %1137 = vmatpush1.msra.mxu0 0.0
  %1138 = vmatprep.subr.mxu0 0.0
  %1139 = vmatpush1.msra.mxu0 0.0
  %1140 = vmatprep.subr.mxu0 0.0
  %1141 = vmatpush1.msra.mxu0 0.0
  %1142 = vmatprep.subr.mxu0 0.0
  %1143 = vmatpush1.msra.mxu0 0.0
  %1144 = vmatprep.subr.mxu0 0.0
  %1145 = vmatpush1.msra.mxu0 0.0
  %1146 = vmatprep.subr.mxu0 0.0
  %1147 = vmatpush1.msra.mxu0 0.0
  %1148 = vmatprep.subr.mxu0 0.0
  %1149 = vmatpush1.msra.mxu0 0.0
  %1150 = vmatprep.subr.mxu0 0.0
  %1151 = vmatpush1.msra.mxu0 0.0
  %1152 = vmatprep.subr.mxu0 0.0
  %1153 = vmatpush1.msra.mxu0 0.0
  %1154 = vmatprep.subr.mxu0 0.0
  %1155 = vmatpush1.msra.mxu0 0.0
  %1156 = vmatprep.subr.mxu0 0.0
  %1157 = vmatpush1.msra.mxu0 0.0
  %1158 = vmatprep.subr.mxu0 0.0
  %1159 = vmatpush1.msra.mxu0 0.0
  %1160 = vmatprep.subr.mxu0 0.0
  %1161 = vmatpush1.msra.mxu0 0.0
  %1162 = vmatprep.mubr.f32.mxu0 0.0
  %1163 = vmatmul.mubr.f32.gmra.mrb[0].mxu0 %v1093
  %v1164 = vpop.f32.mrb[0].mxu0
  %v1165 = vadd.f32 0.0, %v1164
  %v1166 = vpop.f32.mrb[0].mxu0
  %1167 = vdwg.mxu0
  %v1168 = vld [vmem:[%s4 + $0x10] sm:$0xff]
  %1170 = vset.pattern.permute.xlu0 0
  %1171 = vperm.xlu0 %1170, %v1168
  %v1172 = vpop.permute.xlu0 %1171
  %v1174 = vadd.f32 %v1172, %v1087
  %v1175 = vmax.f32 %v1165, 1.1754944e-38
  %v1176 = vlog2.pop %v1175
  %v1177 = vmul.f32 %v1176, 0.6931472
  %v1178 = vadd.f32 %v1174, %v1177
  %v1179 = vld [vmem:[%s338] sm:$0xf]
  %v1180 = vadd.f32 %v1179, %v1178
  %v1181 = vsel %vm22, %v1180, -inf
  %v1182 = vrot.slane %v1181, 4
  %v1183 = vmax.f32 %v1181, %v1182
  %v1184 = vrot.slane %v1183, 2
  %v1185 = vmax.f32 %v1183, %v1184
  %v1186 = vrot.slane %v1185, 1
  %v1187 = vmax.f32 %v1185, %v1186
  %v1188 = vsub.f32 %v1180, %v1187
  %v1189 = vmul.f32 %v1188, 1.442695
  %v1190 = vpow.pop %v1189
  %v1191 = vsel %vm22, %v1190, 0.0
  %v1192 = vrot.slane %v1191, 4
  %v1193 = vadd.f32 %v1191, %v1192
  %v1194 = vrot.slane %v1193, 2
  %v1195 = vadd.f32 %v1193, %v1194
  %v1196 = vrot.slane %v1195, 1
  %v1197 = vadd.f32 %v1195, %v1196
  %v1198 = vlog2.pop %v1197
  %v1199 = vmul.f32 %v1198, 0.6931472
  %v1200 = vadd.f32 %v1187, %v1199
  %v1201 = vsub.f32 %v1180, %v1200
  %s1202 = scalar_lea.vmem %s5, 20
  %1203 = vst [vmem:[%s1202] sm:$0xf] %v1201
  %v1204 = vld [vmem:[%s440] sm:$0xf]
  %v1206 = vrot.slane %v1178, 4
  %v1208 = vadd.f32 %v1204, %v1206
  %v1209 = vsel %vm22, %v1208, -inf
  %v1210 = vrot.slane %v1209, 4
  %v1211 = vmax.f32 %v1209, %v1210
  %v1212 = vrot.slane %v1211, 2
  %v1213 = vmax.f32 %v1211, %v1212
  %v1214 = vrot.slane %v1213, 1
  %v1215 = vmax.f32 %v1213, %v1214
  %v1216 = vsub.f32 %v1208, %v1215
  %v1217 = vmul.f32 %v1216, 1.442695
  %v1218 = vpow.pop %v1217
  %v1219 = vsel %vm22, %v1218, 0.0
  %v1220 = vrot.slane %v1219, 4
  %v1221 = vadd.f32 %v1219, %v1220
  %v1222 = vrot.slane %v1221, 2
  %v1223 = vadd.f32 %v1221, %v1222
  %v1224 = vrot.slane %v1223, 1
  %v1225 = vadd.f32 %v1223, %v1224
  %v1226 = vlog2.pop %v1225
  %v1227 = vmul.f32 %v1226, 0.6931472
  %v1228 = vadd.f32 %v1215, %v1227
  %v1229 = vsub.f32 %v1208, %v1228
  %s1230 = scalar_lea.vmem %s5, 24
  %1231 = vst [vmem:[%s1230] sm:$0xf] %v1229
  %v1232 = vld [vmem:[%s124] sm:$0xf]
  %v1233 = vadd.f32 %v1232, %v1026
  %v1234 = vsel %vm22, %v1233, -inf
  %v1235 = vrot.slane %v1234, 4
  %v1236 = vmax.f32 %v1234, %v1235
  %v1237 = vrot.slane %v1236, 2
  %v1238 = vmax.f32 %v1236, %v1237
  %v1239 = vrot.slane %v1238, 1
  %v1240 = vmax.f32 %v1238, %v1239
  %v1241 = vsub.f32 %v1233, %v1240
  %v1242 = vmul.f32 %v1241, 1.442695
  %v1243 = vpow.pop %v1242
  %v1244 = vld [vmem:[%s3 + $0x18] sm:$0xf]
  %v1246 = vsel %vm35, %v1244, 0
  %v1249 = vsel %vm22, %v1243, 0
  %1251 = vmatprep.subr.mxu0 0.0
  %1252 = vmatpush1.msra.mxu0 %v1249
  %1253 = vmatprep.subr.mxu0 0.0
  %1254 = vmatpush1.msra.mxu0 0.0
  %1255 = vmatprep.subr.mxu0 0.0
  %1256 = vmatpush1.msra.mxu0 0.0
  %1257 = vmatprep.subr.mxu0 0.0
  %1258 = vmatpush1.msra.mxu0 0.0
  %1259 = vmatprep.subr.mxu0 0.0
  %1260 = vmatpush1.msra.mxu0 0.0
  %1261 = vmatprep.subr.mxu0 0.0
  %1262 = vmatpush1.msra.mxu0 0.0
  %1263 = vmatprep.subr.mxu0 0.0
  %1264 = vmatpush1.msra.mxu0 0.0
  %1265 = vmatprep.subr.mxu0 0.0
  %1266 = vmatpush1.msra.mxu0 0.0
  %1267 = vmatprep.subr.mxu0 0.0
  %1268 = vmatpush1.msra.mxu0 0.0
  %1269 = vmatprep.subr.mxu0 0.0
  %1270 = vmatpush1.msra.mxu0 0.0
  %1271 = vmatprep.subr.mxu0 0.0
  %1272 = vmatpush1.msra.mxu0 0.0
  %1273 = vmatprep.subr.mxu0 0.0
  %1274 = vmatpush1.msra.mxu0 0.0
  %1275 = vmatprep.subr.mxu0 0.0
  %1276 = vmatpush1.msra.mxu0 0.0
  %1277 = vmatprep.subr.mxu0 0.0
  %1278 = vmatpush1.msra.mxu0 0.0
  %1279 = vmatprep.subr.mxu0 0.0
  %1280 = vmatpush1.msra.mxu0 0.0
  %1281 = vmatprep.subr.mxu0 0.0
  %1282 = vmatpush1.msra.mxu0 0.0
  %1283 = vmatprep.subr.mxu0 0.0
  %1284 = vmatpush1.msra.mxu0 0.0
  %1285 = vmatprep.subr.mxu0 0.0
  %1286 = vmatpush1.msra.mxu0 0.0
  %1287 = vmatprep.subr.mxu0 0.0
  %1288 = vmatpush1.msra.mxu0 0.0
  %1289 = vmatprep.subr.mxu0 0.0
  %1290 = vmatpush1.msra.mxu0 0.0
  %1291 = vmatprep.subr.mxu0 0.0
  %1292 = vmatpush1.msra.mxu0 0.0
  %1293 = vmatprep.subr.mxu0 0.0
  %1294 = vmatpush1.msra.mxu0 0.0
  %1295 = vmatprep.subr.mxu0 0.0
  %1296 = vmatpush1.msra.mxu0 0.0
  %1297 = vmatprep.subr.mxu0 0.0
  %1298 = vmatpush1.msra.mxu0 0.0
  %1299 = vmatprep.subr.mxu0 0.0
  %1300 = vmatpush1.msra.mxu0 0.0
  %1301 = vmatprep.subr.mxu0 0.0
  %1302 = vmatpush1.msra.mxu0 0.0
  %1303 = vmatprep.subr.mxu0 0.0
  %1304 = vmatpush1.msra.mxu0 0.0
  %1305 = vmatprep.subr.mxu0 0.0
  %1306 = vmatpush1.msra.mxu0 0.0
  %1307 = vmatprep.subr.mxu0 0.0
  %1308 = vmatpush1.msra.mxu0 0.0
  %1309 = vmatprep.subr.mxu0 0.0
  %1310 = vmatpush1.msra.mxu0 0.0
  %1311 = vmatprep.subr.mxu0 0.0
  %1312 = vmatpush1.msra.mxu0 0.0
  %1313 = vmatprep.subr.mxu0 0.0
  %1314 = vmatpush1.msra.mxu0 0.0
  %1315 = vmatprep.mubr.f32.mxu0 0.0
  %1316 = vmatmul.mubr.f32.gmra.mrb[0].mxu0 %v1246
  %v1317 = vpop.f32.mrb[0].mxu0
  %v1318 = vadd.f32 0.0, %v1317
  %v1319 = vpop.f32.mrb[0].mxu0
  %1320 = vdwg.mxu0
  %v1321 = vld [vmem:[%s4 + $0x18] sm:$0xf]
  %1323 = vset.pattern.permute.xlu0 0
  %1324 = vperm.xlu0 %1323, %v1321
  %v1325 = vpop.permute.xlu0 %1324
  %v1327 = vadd.f32 %v1325, %v1240
  %v1328 = vmax.f32 %v1318, 1.1754944e-38
  %v1329 = vlog2.pop %v1328
  %v1330 = vmul.f32 %v1329, 0.6931472
  %v1331 = vadd.f32 %v1327, %v1330
  %v1332 = vld [vmem:[%s20] sm:$0xf]
  %v1333 = vadd.f32 %v1332, %v1331
  %v1334 = vsel %vm22, %v1333, -inf
  %v1335 = vrot.slane %v1334, 4
  %v1336 = vmax.f32 %v1334, %v1335
  %v1337 = vrot.slane %v1336, 2
  %v1338 = vmax.f32 %v1336, %v1337
  %v1339 = vrot.slane %v1338, 1
  %v1340 = vmax.f32 %v1338, %v1339
  %v1341 = vsub.f32 %v1333, %v1340
  %v1342 = vmul.f32 %v1341, 1.442695
  %v1343 = vpow.pop %v1342
  %v1344 = vsel %vm22, %v1343, 0.0
  %v1345 = vrot.slane %v1344, 4
  %v1346 = vadd.f32 %v1344, %v1345
  %v1347 = vrot.slane %v1346, 2
  %v1348 = vadd.f32 %v1346, %v1347
  %v1349 = vrot.slane %v1348, 1
  %v1350 = vadd.f32 %v1348, %v1349
  %v1351 = vlog2.pop %v1350
  %v1352 = vmul.f32 %v1351, 0.6931472
  %v1353 = vadd.f32 %v1340, %v1352
  %v1354 = vsub.f32 %v1333, %v1353
  %s1355 = scalar_lea.vmem %s5, 28
  %1356 = vst [vmem:[%s1355] sm:$0xf] %v1354
  // Predicated region
  $region22: #{_lambda_.1} parent=0 // pred_check
    _
  $region23: #{_lambda_.1} parent=0 // pred_check_branch
    %1358 = sbr.rel (0) target = $region25
  $region24: #{_lambda_.1} parent=0 // pred_region
    _
  $region25: #{_lambda_.1} parent=0 // pred_fallthru
    _
  // Predicated region
  $region26: #{_lambda_.1} parent=0 // pred_check
    _
  $region27: #{_lambda_.1} parent=0 // pred_check_branch
    %1360 = sbr.rel (0) target = $region29
  $region28: #{_lambda_.1} parent=0 // pred_region
    _
  $region29: #{_lambda_.1} parent=0 // pred_fallthru
    _

</llo_original>
